<compile_context>
chip_gen: v7x
topology: tpu7x:2x2x1
jax: 0.10.0
libtpu: 0.0.40
codegen_flags: <defaults>
</compile_context>

<pallas_src>
import math
import jax
import jax.numpy as jnp
from jax.experimental import pallas as pl
from jax.experimental.pallas import tpu as pltpu


def _round_up(x, m):
    return (x + m - 1) // m * m


def _vmem_capacity_bytes():
    """Physical VMEM per TensorCore (fallback: 64 MiB, the v7x minimum)."""
    try:
        return int(pltpu.get_tpu_info().vmem_capacity_bytes)
    except Exception:
        return 64 * 1024 * 1024


def _vmem_estimate(block_t, block_b, I, Hp, mm_itemsize):
    """Rough per-grid-step VMEM footprint in bytes for the fused kernel."""
    G = 4 * Hp
    weights = (I * G + Hp * G) * mm_itemsize + G * 4        # Buffered(1) residents
    x_blk = 2 * block_t * block_b * I * mm_itemsize         # double-buffered input
    out_blk = 2 * block_t * block_b * Hp * 4                # double-buffered output
    state = 2 * 2 * block_b * Hp * 4                        # hN / cN output blocks
    scratch = block_t * block_b * G * 4 + 2 * block_b * Hp * 4
    return weights + x_blk + out_blk + state + scratch


def _resident_spec(shape, index_map):
    """Single-buffered BlockSpec for constant-index (resident) blocks."""
    try:
        return pl.BlockSpec(shape, index_map, pipeline_mode=pl.Buffered(1))
    except TypeError:
        # older jax without pipeline_mode kwarg: fall back to default buffering
        return pl.BlockSpec(shape, index_map)


# ---------------------------------------------------------------------------
# Fused kernel: per time-chunk input projection + recurrence.
# grid = (batch_tiles, time_chunks); time is the inner, sequential axis.
# ---------------------------------------------------------------------------
def _make_lstm_kernel(T_true, needs_mask, unroll):
    def kernel(x_ref, wih_ref, whh_ref, bias_ref,
               out_ref, hN_ref, cN_ref,
               px_sc, h_sc, c_sc):
        t_chunk = pl.program_id(1)

        @pl.when(t_chunk == 0)
        def _():
            h_sc[...] = jnp.zeros_like(h_sc)
            c_sc[...] = jnp.zeros_like(c_sc)

        Tc, Bb, I = x_ref.shape
        Hp = h_sc.shape[-1]

        # ---- fused input projection for the whole chunk: one big MXU matmul
        #      (M = Tc*Bb rows), off the serial recurrence path, no HBM trip.
        x2d = x_ref[...].reshape(Tc * Bb, I)
        px = jnp.dot(x2d, wih_ref[...], preferred_element_type=jnp.float32)
        px_sc[...] = (px + bias_ref[...]).reshape(Tc, Bb, 4 * Hp)

        whh = whh_ref[...]  # resident, single-buffered

        def step(s, carry):
            # single recurrent matmul per step; x-projection + bias pre-folded
            preact = px_sc[s] + jnp.dot(
                h_sc[...].astype(whh.dtype), whh,
                preferred_element_type=jnp.float32)
            i_t = jax.nn.sigmoid(preact[:, 0 * Hp:1 * Hp])
            f_t = jax.nn.sigmoid(preact[:, 1 * Hp:2 * Hp])
            o_t = jax.nn.sigmoid(preact[:, 2 * Hp:3 * Hp])
            g_t = jnp.tanh(preact[:, 3 * Hp:4 * Hp])

            c_new = c_sc[...] * f_t + i_t * g_t
            h_new = o_t * jnp.tanh(c_new)

            if needs_mask:  # static python branch; only emitted when T was padded
                valid = (t_chunk * Tc + s) < T_true
                c_new = jnp.where(valid, c_new, c_sc[...])
                h_new = jnp.where(valid, h_new, h_sc[...])

            c_sc[...] = c_new
            h_sc[...] = h_new
            out_ref[s] = h_new.astype(out_ref.dtype)
            return carry

        jax.lax.fori_loop(0, Tc, step, 0, unroll=min(Tc, unroll))

        # only the very last chunk writes the final (h, c)
        @pl.when(t_chunk == pl.num_programs(1) - 1)
        def _():
            hN_ref[...] = h_sc[...].astype(hN_ref.dtype)
            cN_ref[...] = c_sc[...].astype(cN_ref.dtype)

    return kernel


# ---------------------------------------------------------------------------
# Wrapper
# ---------------------------------------------------------------------------
def lstm_forward(x, w_ih, w_hh, b_ih, b_hh, *,
                 matmul_dtype=jnp.float32, block_t=None, block_b=None,
                 unroll=8):
    """x: (T, B, I); w_ih: (4H, I); w_hh: (4H, H); b_*: (4H,).

    Returns (output (T, B, H), (h_T, c_T)) matching the PyTorch module with
    hidden=None (eval / no dropout).  Set matmul_dtype=jnp.bfloat16 on v6e/v7x
    for full-rate MXU + half the resident-weight VMEM (carries, gate math and
    accumulation stay f32); loosen tolerances accordingly.
    """
    T, B, I = x.shape
    H = w_ih.shape[0] // 4
    mm_itemsize = jnp.dtype(matmul_dtype).itemsize

    # ---- lane/sublane friendly padding (numerically inert, see below) -----
    Hp = _round_up(H, 128)                      # gate slices on 128-lane edges
    sub = 8 if mm_itemsize >= 4 else (16 if mm_itemsize == 2 else 32)
    Bp = _round_up(B, sub)
    G = 4 * Hp

    def pad_gate_cols(w):  # (rows, 4H) -> (rows, 4Hp), gate-blocked zero pad
        rows = w.shape[0]
        out = jnp.zeros((rows, G), jnp.float32)
        for k in range(4):
            out = out.at[:, k * Hp:k * Hp + H].set(w[:, k * H:(k + 1) * H])
        return out

    wih_t = pad_gate_cols(jnp.asarray(w_ih, jnp.float32).T)               # (I, G)
    whh_t = pad_gate_cols(jnp.asarray(w_hh, jnp.float32).T)               # (H, G)
    whh_t = jnp.zeros((Hp, G), jnp.float32).at[:H, :].set(whh_t)          # (Hp, G)
    bias = pad_gate_cols(jnp.asarray(b_ih + b_hh, jnp.float32)[None, :])  # (1, G)
    # Padded hidden lanes stay exactly 0 through the recurrence (zero weight
    # columns/rows + zero bias), padded batch rows are independent and sliced
    # off, so zero padding is numerically inert.

    # ---- tiling ------------------------------------------------------------
    if block_b is None:
        block_b = Bp  # single batch tile by default
        # TODO(synk): on v7x split into >=2 batch tiles only when block_b >= 128
    assert Bp % block_b == 0, "block_b must divide padded batch"
    assert block_b % sub == 0, "block_b must be a sublane multiple"

    vmem_cap = _vmem_capacity_bytes()
    budget = vmem_cap // 2  # leave headroom for compiler-internal scratch
    if block_t is None:
        cand = [c for c in (64, 32, 16, 8, 4, 2, 1)
                if c <= _round_up(max(T, 1), 8)]
        block_t = next(
            (c for c in cand
             if _vmem_estimate(c, block_b, I, Hp, mm_itemsize) <= budget), 1)
    assert block_t >= 1
    T_pad = _round_up(T, block_t)       # pad T instead of degrading to block_t=1
    needs_mask = (T_pad != T)

    est = _vmem_estimate(block_t, block_b, I, Hp, mm_itemsize)
    vmem_limit = int(min(vmem_cap * 0.9,
                         max(32 * 1024 * 1024, est * 1.3 + (4 << 20))))

    # ---- host-side input prep ---------------------------------------------
    x_p = jnp.zeros((T_pad, Bp, I), jnp.float32).at[:T, :B, :].set(
        jnp.asarray(x, jnp.float32))

    # optional narrow MXU operands, stored narrow in HBM; accumulation stays f32
    x_mx = x_p.astype(matmul_dtype)
    wih_mx = wih_t.astype(matmul_dtype)
    whh_mx = whh_t.astype(matmul_dtype)

    n_bt = Bp // block_b
    n_tc = T_pad // block_t

    grid_spec = pltpu.PrefetchScalarGridSpec(
        num_scalar_prefetch=0,
        # batch outer ("parallel"), time inner ("arbitrary", sequential).
        grid=(n_bt, n_tc),
        in_specs=[
            pl.BlockSpec((block_t, block_b, I), lambda b, t: (t, b, 0)),
            _resident_spec((I, G), lambda b, t: (0, 0)),    # W_ih^T resident
            _resident_spec((Hp, G), lambda b, t: (0, 0)),   # W_hh^T resident
            _resident_spec((1, G), lambda b, t: (0, 0)),    # bias resident
        ],
        out_specs=[
            pl.BlockSpec((block_t, block_b, Hp), lambda b, t: (t, b, 0)),
            pl.BlockSpec((block_b, Hp), lambda b, t: (b, 0)),   # final h
            pl.BlockSpec((block_b, Hp), lambda b, t: (b, 0)),   # final c
        ],
        scratch_shapes=[
            pltpu.VMEM((block_t, block_b, G), jnp.float32),     # per-chunk preact_x
            pltpu.VMEM((block_b, Hp), jnp.float32),             # h carry
            pltpu.VMEM((block_b, Hp), jnp.float32),             # c carry
        ],
    )

    out_p, hN_p, cN_p = pl.pallas_call(
        _make_lstm_kernel(T, needs_mask, unroll),
        grid_spec=grid_spec,
        out_shape=(
            # TODO(synk): emit out_p in bf16 on v6e/v7x to halve writeback
            jax.ShapeDtypeStruct((T_pad, Bp, Hp), jnp.float32),
            jax.ShapeDtypeStruct((Bp, Hp), jnp.float32),
            jax.ShapeDtypeStruct((Bp, Hp), jnp.float32),
        ),
        compiler_params=pltpu.CompilerParams(
            dimension_semantics=("parallel", "arbitrary"),
            vmem_limit_bytes=vmem_limit,
        ),
    )(x_mx, wih_mx, whh_mx, bias)

    # strip padding
    return out_p[:T, :B, :H], (hN_p[:B, :H], cN_p[:B, :H])


# ---------------------------------------------------------------------------
# Pure-JAX reference mirroring the PyTorch forward exactly
# ---------------------------------------------------------------------------
def _lstm_ref(x, w_ih, w_hh, b_ih, b_hh):
    T, B, I = x.shape
    H = w_ih.shape[0] // 4

    def step(carry, x_t):
        h, c = carry
        preact = x_t @ w_ih.T + b_ih + h @ w_hh.T + b_hh
        gates = jax.nn.sigmoid(preact[:, : 3 * H])
        g_t = jnp.tanh(preact[:, 3 * H:])
        i_t = gates[:, :H]
        f_t = gates[:, H:2 * H]
        o_t = gates[:, -H:]
        c = c * f_t + i_t * g_t
        h = o_t * jnp.tanh(c)
        return (h, c), h

    h0 = jnp.zeros((B, H), jnp.float32)
    (h, c), ys = jax.lax.scan(step, (h0, h0), x)
    return ys, (h, c)


if __name__ == "__main__":
    T, B = 8, 8
    input_size = 16
    hidden_size = 32

    key = jax.random.PRNGKey(0)
    k_x, k_wi, k_wh, k_bi, k_bh = jax.random.split(key, 5)

    std = 1.0 / math.sqrt(hidden_size)   # reset_parameters(): uniform(-std, std)
    w_ih = jax.random.uniform(k_wi, (4 * hidden_size, input_size), jnp.float32, -std, std)
    w_hh = jax.random.uniform(k_wh, (4 * hidden_size, hidden_size), jnp.float32, -std, std)
    b_ih = jax.random.uniform(k_bi, (4 * hidden_size,), jnp.float32, -std, std)
    b_hh = jax.random.uniform(k_bh, (4 * hidden_size,), jnp.float32, -std, std)

    x = jax.random.normal(k_x, (T, B, input_size), jnp.float32)

    out, (h_T, c_T) = lstm_forward(x, w_ih, w_hh, b_ih, b_hh)
    jax.block_until_ready((out, h_T, c_T))

    out_ref, (h_ref, c_ref) = _lstm_ref(x, w_ih, w_hh, b_ih, b_hh)
    assert jnp.allclose(out, out_ref, atol=1e-5, rtol=1e-5)
    assert jnp.allclose(h_T, h_ref, atol=1e-5, rtol=1e-5)
    assert jnp.allclose(c_T, c_ref, atol=1e-5, rtol=1e-5)

    print("KERNEL_OK")
</pallas_src>

<mosaic_0001>
module attributes {stable_mosaic.version = 11 : i64} {
  func.func @kernel(%arg0: i32, %arg1: i32, %arg2: memref<8x8x16xf32, #tpu.memory_space<vmem>>, %arg3: memref<16x512xf32, #tpu.memory_space<vmem>>, %arg4: memref<128x512xf32, #tpu.memory_space<vmem>>, %arg5: memref<1x512xf32, #tpu.memory_space<vmem>>, %arg6: memref<8x8x128xf32, #tpu.memory_space<vmem>>, %arg7: memref<8x128xf32, #tpu.memory_space<vmem>>, %arg8: memref<8x128xf32, #tpu.memory_space<vmem>>, %arg9: memref<8x8x512xf32, #tpu.memory_space<vmem>>, %arg10: memref<8x128xf32, #tpu.memory_space<vmem>>, %arg11: memref<8x128xf32, #tpu.memory_space<vmem>>) attributes {dimension_semantics = [#tpu.dimension_semantics<parallel>, #tpu.dimension_semantics<arbitrary>], iteration_bounds = array<i64: 1, 1>, scalar_prefetch = 0 : i64, scratch_operands = 3 : i64, tpu.core_type = #tpu.core_type<tc>, window_params = [{transform_indices = @transform_0, window_bounds = array<i64: 8, 8, 16>}, {pipeline_mode = #tpu.pipeline_mode<synchronous>, transform_indices = @transform_1, window_bounds = array<i64: 16, 512>}, {pipeline_mode = #tpu.pipeline_mode<synchronous>, transform_indices = @transform_2, window_bounds = array<i64: 128, 512>}, {pipeline_mode = #tpu.pipeline_mode<synchronous>, transform_indices = @transform_3, window_bounds = array<i64: 1, 512>}, {transform_indices = @transform_4, window_bounds = array<i64: 8, 8, 128>}, {transform_indices = @transform_5, window_bounds = array<i64: 8, 128>}, {transform_indices = @transform_6, window_bounds = array<i64: 8, 128>}]} {
    %c0_i32 = arith.constant 0 : i32
    %0 = arith.cmpi eq, %arg1, %c0_i32 : i32
    %1 = arith.extui %0 : i1 to i32
    %c0_i32_0 = arith.constant 0 : i32
    %2 = arith.cmpi ne, %1, %c0_i32_0 : i32
    scf.if %2 {
      %cst_143 = arith.constant 0.000000e+00 : f32
      %320 = vector.broadcast %cst_143 : f32 to vector<8x128xf32>
      %c0_144 = arith.constant 0 : index
      %c0_145 = arith.constant 0 : index
      %321 = vector.load %arg10[%c0_144, %c0_145] : memref<8x128xf32, #tpu.memory_space<vmem>>, vector<8x128xf32>
      tpu.vector_store %arg10[%c0_144, %c0_145], %320 {strides = array<i32>} : memref<8x128xf32, #tpu.memory_space<vmem>>, vector<8x128xf32>,
      %cst_146 = arith.constant 0.000000e+00 : f32
      %322 = vector.broadcast %cst_146 : f32 to vector<8x128xf32>
      %c0_147 = arith.constant 0 : index
      %c0_148 = arith.constant 0 : index
      %323 = vector.load %arg11[%c0_147, %c0_148] : memref<8x128xf32, #tpu.memory_space<vmem>>, vector<8x128xf32>
      tpu.vector_store %arg11[%c0_147, %c0_148], %322 {strides = array<i32>} : memref<8x128xf32, #tpu.memory_space<vmem>>, vector<8x128xf32>,
    } else {
    }
    %c0 = arith.constant 0 : index
    %c0_1 = arith.constant 0 : index
    %c0_2 = arith.constant 0 : index
    %3 = vector.load %arg2[%c0, %c0_1, %c0_2] : memref<8x8x16xf32, #tpu.memory_space<vmem>>, vector<8x8x16xf32>
    %4 = vector.shape_cast %3 : vector<8x8x16xf32> to vector<64x16xf32>
    %c0_3 = arith.constant 0 : index
    %c0_4 = arith.constant 0 : index
    %5 = vector.load %arg3[%c0_3, %c0_4] : memref<16x512xf32, #tpu.memory_space<vmem>>, vector<16x512xf32>
    %cst = arith.constant dense<0.000000e+00> : vector<64x512xf32>
    %6 = tpu.matmul %4, %5, %cst {dimension_numbers = #tpu.dot_dimension_numbers<[1], [0], [0], [1], [0, 0, 1, 1], [], []>} : vector<64x16xf32>, vector<16x512xf32>, vector<64x512xf32> -> vector<64x512xf32>
    %c0_5 = arith.constant 0 : index
    %c0_6 = arith.constant 0 : index
    %7 = vector.load %arg5[%c0_5, %c0_6] : memref<1x512xf32, #tpu.memory_space<vmem>>, vector<1x512xf32>
    %8 = vector.broadcast %7 : vector<1x512xf32> to vector<64x512xf32>
    %9 = arith.addf %6, %8 : vector<64x512xf32>
    %10 = vector.shape_cast %9 : vector<64x512xf32> to vector<8x8x512xf32>
    %c0_7 = arith.constant 0 : index
    %c0_8 = arith.constant 0 : index
    %c0_9 = arith.constant 0 : index
    %11 = vector.load %arg9[%c0_7, %c0_8, %c0_9] : memref<8x8x512xf32, #tpu.memory_space<vmem>>, vector<8x8x512xf32>
    tpu.vector_store %arg9[%c0_7, %c0_8, %c0_9], %10 {strides = array<i32>} : memref<8x8x512xf32, #tpu.memory_space<vmem>>, vector<8x8x512xf32>,
    %c0_10 = arith.constant 0 : index
    %c0_11 = arith.constant 0 : index
    %12 = vector.load %arg4[%c0_10, %c0_11] : memref<128x512xf32, #tpu.memory_space<vmem>>, vector<128x512xf32>
    %c0_i32_12 = arith.constant 0 : i32
    %13 = arith.index_cast %c0_i32_12 : i32 to index
    %c0_13 = arith.constant 0 : index
    %c0_14 = arith.constant 0 : index
    %14 = vector.load %arg9[%13, %c0_13, %c0_14] : memref<8x8x512xf32, #tpu.memory_space<vmem>>, vector<1x8x512xf32>
    %15 = vector.shape_cast %14 : vector<1x8x512xf32> to vector<8x512xf32>
    %c0_15 = arith.constant 0 : index
    %c0_16 = arith.constant 0 : index
    %16 = vector.load %arg10[%c0_15, %c0_16] : memref<8x128xf32, #tpu.memory_space<vmem>>, vector<8x128xf32>
    %cst_17 = arith.constant dense<0.000000e+00> : vector<8x512xf32>
    %17 = tpu.matmul %16, %12, %cst_17 {dimension_numbers = #tpu.dot_dimension_numbers<[1], [0], [0], [1], [0, 0, 1, 1], [], []>} : vector<8x128xf32>, vector<128x512xf32>, vector<8x512xf32> -> vector<8x512xf32>
    %18 = arith.addf %15, %17 : vector<8x512xf32>
    %19 = vector.extract_strided_slice %18 {offsets = [0, 0], sizes = [8, 128], strides = [1, 1]} : vector<8x512xf32> to vector<8x128xf32>
    %20 = arith.negf %19 : vector<8x128xf32>
    %21 = math.exp %20 : vector<8x128xf32>
    %cst_18 = arith.constant 1.000000e+00 : f32
    %22 = vector.broadcast %cst_18 : f32 to vector<8x128xf32>
    %23 = arith.addf %22, %21 : vector<8x128xf32>
    %24 = arith.divf %22, %23 : vector<8x128xf32>
    %25 = vector.extract_strided_slice %18 {offsets = [0, 128], sizes = [8, 128], strides = [1, 1]} : vector<8x512xf32> to vector<8x128xf32>
    %26 = arith.negf %25 : vector<8x128xf32>
    %27 = math.exp %26 : vector<8x128xf32>
    %cst_19 = arith.constant 1.000000e+00 : f32
    %28 = vector.broadcast %cst_19 : f32 to vector<8x128xf32>
    %29 = arith.addf %28, %27 : vector<8x128xf32>
    %30 = arith.divf %28, %29 : vector<8x128xf32>
    %31 = vector.extract_strided_slice %18 {offsets = [0, 256], sizes = [8, 128], strides = [1, 1]} : vector<8x512xf32> to vector<8x128xf32>
    %32 = arith.negf %31 : vector<8x128xf32>
    %33 = math.exp %32 : vector<8x128xf32>
    %cst_20 = arith.constant 1.000000e+00 : f32
    %34 = vector.broadcast %cst_20 : f32 to vector<8x128xf32>
    %35 = arith.addf %34, %33 : vector<8x128xf32>
    %36 = arith.divf %34, %35 : vector<8x128xf32>
    %37 = vector.extract_strided_slice %18 {offsets = [0, 384], sizes = [8, 128], strides = [1, 1]} : vector<8x512xf32> to vector<8x128xf32>
    %38 = math.tanh %37 : vector<8x128xf32>
    %c0_21 = arith.constant 0 : index
    %c0_22 = arith.constant 0 : index
    %39 = vector.load %arg11[%c0_21, %c0_22] : memref<8x128xf32, #tpu.memory_space<vmem>>, vector<8x128xf32>
    %40 = arith.mulf %39, %30 : vector<8x128xf32>
    %41 = arith.mulf %24, %38 : vector<8x128xf32>
    %42 = arith.addf %40, %41 : vector<8x128xf32>
    %43 = math.tanh %42 : vector<8x128xf32>
    %44 = arith.mulf %36, %43 : vector<8x128xf32>
    %c0_23 = arith.constant 0 : index
    %c0_24 = arith.constant 0 : index
    %45 = vector.load %arg11[%c0_23, %c0_24] : memref<8x128xf32, #tpu.memory_space<vmem>>, vector<8x128xf32>
    tpu.vector_store %arg11[%c0_23, %c0_24], %42 {strides = array<i32>} : memref<8x128xf32, #tpu.memory_space<vmem>>, vector<8x128xf32>,
    %c0_25 = arith.constant 0 : index
    %c0_26 = arith.constant 0 : index
    %46 = vector.load %arg10[%c0_25, %c0_26] : memref<8x128xf32, #tpu.memory_space<vmem>>, vector<8x128xf32>
    tpu.vector_store %arg10[%c0_25, %c0_26], %44 {strides = array<i32>} : memref<8x128xf32, #tpu.memory_space<vmem>>, vector<8x128xf32>,
    %47 = arith.index_cast %c0_i32_12 : i32 to index
    %c0_27 = arith.constant 0 : index
    %c0_28 = arith.constant 0 : index
    %48 = vector.load %arg6[%47, %c0_27, %c0_28] : memref<8x8x128xf32, #tpu.memory_space<vmem>>, vector<1x8x128xf32>
    %49 = vector.shape_cast %48 : vector<1x8x128xf32> to vector<8x128xf32>
    %50 = vector.shape_cast %44 : vector<8x128xf32> to vector<1x8x128xf32>
    tpu.vector_store %arg6[%47, %c0_27, %c0_28], %50 {strides = array<i32>} : memref<8x8x128xf32, #tpu.memory_space<vmem>>, vector<1x8x128xf32>,
    %c1_i32 = arith.constant 1 : i32
    %51 = arith.index_cast %c1_i32 : i32 to index
    %c0_29 = arith.constant 0 : index
    %c0_30 = arith.constant 0 : index
    %52 = vector.load %arg9[%51, %c0_29, %c0_30] : memref<8x8x512xf32, #tpu.memory_space<vmem>>, vector<1x8x512xf32>
    %53 = vector.shape_cast %52 : vector<1x8x512xf32> to vector<8x512xf32>
    %c0_31 = arith.constant 0 : index
    %c0_32 = arith.constant 0 : index
    %54 = vector.load %arg10[%c0_31, %c0_32] : memref<8x128xf32, #tpu.memory_space<vmem>>, vector<8x128xf32>
    %cst_33 = arith.constant dense<0.000000e+00> : vector<8x512xf32>
    %55 = tpu.matmul %54, %12, %cst_33 {dimension_numbers = #tpu.dot_dimension_numbers<[1], [0], [0], [1], [0, 0, 1, 1], [], []>} : vector<8x128xf32>, vector<128x512xf32>, vector<8x512xf32> -> vector<8x512xf32>
    %56 = arith.addf %53, %55 : vector<8x512xf32>
    %57 = vector.extract_strided_slice %56 {offsets = [0, 0], sizes = [8, 128], strides = [1, 1]} : vector<8x512xf32> to vector<8x128xf32>
    %58 = arith.negf %57 : vector<8x128xf32>
    %59 = math.exp %58 : vector<8x128xf32>
    %cst_34 = arith.constant 1.000000e+00 : f32
    %60 = vector.broadcast %cst_34 : f32 to vector<8x128xf32>
    %61 = arith.addf %60, %59 : vector<8x128xf32>
    %62 = arith.divf %60, %61 : vector<8x128xf32>
    %63 = vector.extract_strided_slice %56 {offsets = [0, 128], sizes = [8, 128], strides = [1, 1]} : vector<8x512xf32> to vector<8x128xf32>
    %64 = arith.negf %63 : vector<8x128xf32>
    %65 = math.exp %64 : vector<8x128xf32>
    %cst_35 = arith.constant 1.000000e+00 : f32
    %66 = vector.broadcast %cst_35 : f32 to vector<8x128xf32>
    %67 = arith.addf %66, %65 : vector<8x128xf32>
    %68 = arith.divf %66, %67 : vector<8x128xf32>
    %69 = vector.extract_strided_slice %56 {offsets = [0, 256], sizes = [8, 128], strides = [1, 1]} : vector<8x512xf32> to vector<8x128xf32>
    %70 = arith.negf %69 : vector<8x128xf32>
    %71 = math.exp %70 : vector<8x128xf32>
    %cst_36 = arith.constant 1.000000e+00 : f32
    %72 = vector.broadcast %cst_36 : f32 to vector<8x128xf32>
    %73 = arith.addf %72, %71 : vector<8x128xf32>
    %74 = arith.divf %72, %73 : vector<8x128xf32>
    %75 = vector.extract_strided_slice %56 {offsets = [0, 384], sizes = [8, 128], strides = [1, 1]} : vector<8x512xf32> to vector<8x128xf32>
    %76 = math.tanh %75 : vector<8x128xf32>
    %c0_37 = arith.constant 0 : index
    %c0_38 = arith.constant 0 : index
    %77 = vector.load %arg11[%c0_37, %c0_38] : memref<8x128xf32, #tpu.memory_space<vmem>>, vector<8x128xf32>
    %78 = arith.mulf %77, %68 : vector<8x128xf32>
    %79 = arith.mulf %62, %76 : vector<8x128xf32>
    %80 = arith.addf %78, %79 : vector<8x128xf32>
    %81 = math.tanh %80 : vector<8x128xf32>
    %82 = arith.mulf %74, %81 : vector<8x128xf32>
    %c0_39 = arith.constant 0 : index
    %c0_40 = arith.constant 0 : index
    %83 = vector.load %arg11[%c0_39, %c0_40] : memref<8x128xf32, #tpu.memory_space<vmem>>, vector<8x128xf32>
    tpu.vector_store %arg11[%c0_39, %c0_40], %80 {strides = array<i32>} : memref<8x128xf32, #tpu.memory_space<vmem>>, vector<8x128xf32>,
    %c0_41 = arith.constant 0 : index
    %c0_42 = arith.constant 0 : index
    %84 = vector.load %arg10[%c0_41, %c0_42] : memref<8x128xf32, #tpu.memory_space<vmem>>, vector<8x128xf32>
    tpu.vector_store %arg10[%c0_41, %c0_42], %82 {strides = array<i32>} : memref<8x128xf32, #tpu.memory_space<vmem>>, vector<8x128xf32>,
    %85 = arith.index_cast %c1_i32 : i32 to index
    %c0_43 = arith.constant 0 : index
    %c0_44 = arith.constant 0 : index
    %86 = vector.load %arg6[%85, %c0_43, %c0_44] : memref<8x8x128xf32, #tpu.memory_space<vmem>>, vector<1x8x128xf32>
    %87 = vector.shape_cast %86 : vector<1x8x128xf32> to vector<8x128xf32>
    %88 = vector.shape_cast %82 : vector<8x128xf32> to vector<1x8x128xf32>
    tpu.vector_store %arg6[%85, %c0_43, %c0_44], %88 {strides = array<i32>} : memref<8x8x128xf32, #tpu.memory_space<vmem>>, vector<1x8x128xf32>,
    %c2_i32 = arith.constant 2 : i32
    %89 = arith.index_cast %c2_i32 : i32 to index
    %c0_45 = arith.constant 0 : index
    %c0_46 = arith.constant 0 : index
    %90 = vector.load %arg9[%89, %c0_45, %c0_46] : memref<8x8x512xf32, #tpu.memory_space<vmem>>, vector<1x8x512xf32>
    %91 = vector.shape_cast %90 : vector<1x8x512xf32> to vector<8x512xf32>
    %c0_47 = arith.constant 0 : index
    %c0_48 = arith.constant 0 : index
    %92 = vector.load %arg10[%c0_47, %c0_48] : memref<8x128xf32, #tpu.memory_space<vmem>>, vector<8x128xf32>
    %cst_49 = arith.constant dense<0.000000e+00> : vector<8x512xf32>
    %93 = tpu.matmul %92, %12, %cst_49 {dimension_numbers = #tpu.dot_dimension_numbers<[1], [0], [0], [1], [0, 0, 1, 1], [], []>} : vector<8x128xf32>, vector<128x512xf32>, vector<8x512xf32> -> vector<8x512xf32>
    %94 = arith.addf %91, %93 : vector<8x512xf32>
    %95 = vector.extract_strided_slice %94 {offsets = [0, 0], sizes = [8, 128], strides = [1, 1]} : vector<8x512xf32> to vector<8x128xf32>
    %96 = arith.negf %95 : vector<8x128xf32>
    %97 = math.exp %96 : vector<8x128xf32>
    %cst_50 = arith.constant 1.000000e+00 : f32
    %98 = vector.broadcast %cst_50 : f32 to vector<8x128xf32>
    %99 = arith.addf %98, %97 : vector<8x128xf32>
    %100 = arith.divf %98, %99 : vector<8x128xf32>
    %101 = vector.extract_strided_slice %94 {offsets = [0, 128], sizes = [8, 128], strides = [1, 1]} : vector<8x512xf32> to vector<8x128xf32>
    %102 = arith.negf %101 : vector<8x128xf32>
    %103 = math.exp %102 : vector<8x128xf32>
    %cst_51 = arith.constant 1.000000e+00 : f32
    %104 = vector.broadcast %cst_51 : f32 to vector<8x128xf32>
    %105 = arith.addf %104, %103 : vector<8x128xf32>
    %106 = arith.divf %104, %105 : vector<8x128xf32>
    %107 = vector.extract_strided_slice %94 {offsets = [0, 256], sizes = [8, 128], strides = [1, 1]} : vector<8x512xf32> to vector<8x128xf32>
    %108 = arith.negf %107 : vector<8x128xf32>
    %109 = math.exp %108 : vector<8x128xf32>
    %cst_52 = arith.constant 1.000000e+00 : f32
    %110 = vector.broadcast %cst_52 : f32 to vector<8x128xf32>
    %111 = arith.addf %110, %109 : vector<8x128xf32>
    %112 = arith.divf %110, %111 : vector<8x128xf32>
    %113 = vector.extract_strided_slice %94 {offsets = [0, 384], sizes = [8, 128], strides = [1, 1]} : vector<8x512xf32> to vector<8x128xf32>
    %114 = math.tanh %113 : vector<8x128xf32>
    %c0_53 = arith.constant 0 : index
    %c0_54 = arith.constant 0 : index
    %115 = vector.load %arg11[%c0_53, %c0_54] : memref<8x128xf32, #tpu.memory_space<vmem>>, vector<8x128xf32>
    %116 = arith.mulf %115, %106 : vector<8x128xf32>
    %117 = arith.mulf %100, %114 : vector<8x128xf32>
    %118 = arith.addf %116, %117 : vector<8x128xf32>
    %119 = math.tanh %118 : vector<8x128xf32>
    %120 = arith.mulf %112, %119 : vector<8x128xf32>
    %c0_55 = arith.constant 0 : index
    %c0_56 = arith.constant 0 : index
    %121 = vector.load %arg11[%c0_55, %c0_56] : memref<8x128xf32, #tpu.memory_space<vmem>>, vector<8x128xf32>
    tpu.vector_store %arg11[%c0_55, %c0_56], %118 {strides = array<i32>} : memref<8x128xf32, #tpu.memory_space<vmem>>, vector<8x128xf32>,
    %c0_57 = arith.constant 0 : index
    %c0_58 = arith.constant 0 : index
    %122 = vector.load %arg10[%c0_57, %c0_58] : memref<8x128xf32, #tpu.memory_space<vmem>>, vector<8x128xf32>
    tpu.vector_store %arg10[%c0_57, %c0_58], %120 {strides = array<i32>} : memref<8x128xf32, #tpu.memory_space<vmem>>, vector<8x128xf32>,
    %123 = arith.index_cast %c2_i32 : i32 to index
    %c0_59 = arith.constant 0 : index
    %c0_60 = arith.constant 0 : index
    %124 = vector.load %arg6[%123, %c0_59, %c0_60] : memref<8x8x128xf32, #tpu.memory_space<vmem>>, vector<1x8x128xf32>
    %125 = vector.shape_cast %124 : vector<1x8x128xf32> to vector<8x128xf32>
    %126 = vector.shape_cast %120 : vector<8x128xf32> to vector<1x8x128xf32>
    tpu.vector_store %arg6[%123, %c0_59, %c0_60], %126 {strides = array<i32>} : memref<8x8x128xf32, #tpu.memory_space<vmem>>, vector<1x8x128xf32>,
    %c3_i32 = arith.constant 3 : i32
    %127 = arith.index_cast %c3_i32 : i32 to index
    %c0_61 = arith.constant 0 : index
    %c0_62 = arith.constant 0 : index
    %128 = vector.load %arg9[%127, %c0_61, %c0_62] : memref<8x8x512xf32, #tpu.memory_space<vmem>>, vector<1x8x512xf32>
    %129 = vector.shape_cast %128 : vector<1x8x512xf32> to vector<8x512xf32>
    %c0_63 = arith.constant 0 : index
    %c0_64 = arith.constant 0 : index
    %130 = vector.load %arg10[%c0_63, %c0_64] : memref<8x128xf32, #tpu.memory_space<vmem>>, vector<8x128xf32>
    %cst_65 = arith.constant dense<0.000000e+00> : vector<8x512xf32>
    %131 = tpu.matmul %130, %12, %cst_65 {dimension_numbers = #tpu.dot_dimension_numbers<[1], [0], [0], [1], [0, 0, 1, 1], [], []>} : vector<8x128xf32>, vector<128x512xf32>, vector<8x512xf32> -> vector<8x512xf32>
    %132 = arith.addf %129, %131 : vector<8x512xf32>
    %133 = vector.extract_strided_slice %132 {offsets = [0, 0], sizes = [8, 128], strides = [1, 1]} : vector<8x512xf32> to vector<8x128xf32>
    %134 = arith.negf %133 : vector<8x128xf32>
    %135 = math.exp %134 : vector<8x128xf32>
    %cst_66 = arith.constant 1.000000e+00 : f32
    %136 = vector.broadcast %cst_66 : f32 to vector<8x128xf32>
    %137 = arith.addf %136, %135 : vector<8x128xf32>
    %138 = arith.divf %136, %137 : vector<8x128xf32>
    %139 = vector.extract_strided_slice %132 {offsets = [0, 128], sizes = [8, 128], strides = [1, 1]} : vector<8x512xf32> to vector<8x128xf32>
    %140 = arith.negf %139 : vector<8x128xf32>
    %141 = math.exp %140 : vector<8x128xf32>
    %cst_67 = arith.constant 1.000000e+00 : f32
    %142 = vector.broadcast %cst_67 : f32 to vector<8x128xf32>
    %143 = arith.addf %142, %141 : vector<8x128xf32>
    %144 = arith.divf %142, %143 : vector<8x128xf32>
    %145 = vector.extract_strided_slice %132 {offsets = [0, 256], sizes = [8, 128], strides = [1, 1]} : vector<8x512xf32> to vector<8x128xf32>
    %146 = arith.negf %145 : vector<8x128xf32>
    %147 = math.exp %146 : vector<8x128xf32>
    %cst_68 = arith.constant 1.000000e+00 : f32
    %148 = vector.broadcast %cst_68 : f32 to vector<8x128xf32>
    %149 = arith.addf %148, %147 : vector<8x128xf32>
    %150 = arith.divf %148, %149 : vector<8x128xf32>
    %151 = vector.extract_strided_slice %132 {offsets = [0, 384], sizes = [8, 128], strides = [1, 1]} : vector<8x512xf32> to vector<8x128xf32>
    %152 = math.tanh %151 : vector<8x128xf32>
    %c0_69 = arith.constant 0 : index
    %c0_70 = arith.constant 0 : index
    %153 = vector.load %arg11[%c0_69, %c0_70] : memref<8x128xf32, #tpu.memory_space<vmem>>, vector<8x128xf32>
    %154 = arith.mulf %153, %144 : vector<8x128xf32>
    %155 = arith.mulf %138, %152 : vector<8x128xf32>
    %156 = arith.addf %154, %155 : vector<8x128xf32>
    %157 = math.tanh %156 : vector<8x128xf32>
    %158 = arith.mulf %150, %157 : vector<8x128xf32>
    %c0_71 = arith.constant 0 : index
    %c0_72 = arith.constant 0 : index
    %159 = vector.load %arg11[%c0_71, %c0_72] : memref<8x128xf32, #tpu.memory_space<vmem>>, vector<8x128xf32>
    tpu.vector_store %arg11[%c0_71, %c0_72], %156 {strides = array<i32>} : memref<8x128xf32, #tpu.memory_space<vmem>>, vector<8x128xf32>,
    %c0_73 = arith.constant 0 : index
    %c0_74 = arith.constant 0 : index
    %160 = vector.load %arg10[%c0_73, %c0_74] : memref<8x128xf32, #tpu.memory_space<vmem>>, vector<8x128xf32>
    tpu.vector_store %arg10[%c0_73, %c0_74], %158 {strides = array<i32>} : memref<8x128xf32, #tpu.memory_space<vmem>>, vector<8x128xf32>,
    %161 = arith.index_cast %c3_i32 : i32 to index
    %c0_75 = arith.constant 0 : index
    %c0_76 = arith.constant 0 : index
    %162 = vector.load %arg6[%161, %c0_75, %c0_76] : memref<8x8x128xf32, #tpu.memory_space<vmem>>, vector<1x8x128xf32>
    %163 = vector.shape_cast %162 : vector<1x8x128xf32> to vector<8x128xf32>
    %164 = vector.shape_cast %158 : vector<8x128xf32> to vector<1x8x128xf32>
    tpu.vector_store %arg6[%161, %c0_75, %c0_76], %164 {strides = array<i32>} : memref<8x8x128xf32, #tpu.memory_space<vmem>>, vector<1x8x128xf32>,
    %c4_i32 = arith.constant 4 : i32
    %165 = arith.index_cast %c4_i32 : i32 to index
    %c0_77 = arith.constant 0 : index
    %c0_78 = arith.constant 0 : index
    %166 = vector.load %arg9[%165, %c0_77, %c0_78] : memref<8x8x512xf32, #tpu.memory_space<vmem>>, vector<1x8x512xf32>
    %167 = vector.shape_cast %166 : vector<1x8x512xf32> to vector<8x512xf32>
    %c0_79 = arith.constant 0 : index
    %c0_80 = arith.constant 0 : index
    %168 = vector.load %arg10[%c0_79, %c0_80] : memref<8x128xf32, #tpu.memory_space<vmem>>, vector<8x128xf32>
    %cst_81 = arith.constant dense<0.000000e+00> : vector<8x512xf32>
    %169 = tpu.matmul %168, %12, %cst_81 {dimension_numbers = #tpu.dot_dimension_numbers<[1], [0], [0], [1], [0, 0, 1, 1], [], []>} : vector<8x128xf32>, vector<128x512xf32>, vector<8x512xf32> -> vector<8x512xf32>
    %170 = arith.addf %167, %169 : vector<8x512xf32>
    %171 = vector.extract_strided_slice %170 {offsets = [0, 0], sizes = [8, 128], strides = [1, 1]} : vector<8x512xf32> to vector<8x128xf32>
    %172 = arith.negf %171 : vector<8x128xf32>
    %173 = math.exp %172 : vector<8x128xf32>
    %cst_82 = arith.constant 1.000000e+00 : f32
    %174 = vector.broadcast %cst_82 : f32 to vector<8x128xf32>
    %175 = arith.addf %174, %173 : vector<8x128xf32>
    %176 = arith.divf %174, %175 : vector<8x128xf32>
    %177 = vector.extract_strided_slice %170 {offsets = [0, 128], sizes = [8, 128], strides = [1, 1]} : vector<8x512xf32> to vector<8x128xf32>
    %178 = arith.negf %177 : vector<8x128xf32>
    %179 = math.exp %178 : vector<8x128xf32>
    %cst_83 = arith.constant 1.000000e+00 : f32
    %180 = vector.broadcast %cst_83 : f32 to vector<8x128xf32>
    %181 = arith.addf %180, %179 : vector<8x128xf32>
    %182 = arith.divf %180, %181 : vector<8x128xf32>
    %183 = vector.extract_strided_slice %170 {offsets = [0, 256], sizes = [8, 128], strides = [1, 1]} : vector<8x512xf32> to vector<8x128xf32>
    %184 = arith.negf %183 : vector<8x128xf32>
    %185 = math.exp %184 : vector<8x128xf32>
    %cst_84 = arith.constant 1.000000e+00 : f32
    %186 = vector.broadcast %cst_84 : f32 to vector<8x128xf32>
    %187 = arith.addf %186, %185 : vector<8x128xf32>
    %188 = arith.divf %186, %187 : vector<8x128xf32>
    %189 = vector.extract_strided_slice %170 {offsets = [0, 384], sizes = [8, 128], strides = [1, 1]} : vector<8x512xf32> to vector<8x128xf32>
    %190 = math.tanh %189 : vector<8x128xf32>
    %c0_85 = arith.constant 0 : index
    %c0_86 = arith.constant 0 : index
    %191 = vector.load %arg11[%c0_85, %c0_86] : memref<8x128xf32, #tpu.memory_space<vmem>>, vector<8x128xf32>
    %192 = arith.mulf %191, %182 : vector<8x128xf32>
    %193 = arith.mulf %176, %190 : vector<8x128xf32>
    %194 = arith.addf %192, %193 : vector<8x128xf32>
    %195 = math.tanh %194 : vector<8x128xf32>
    %196 = arith.mulf %188, %195 : vector<8x128xf32>
    %c0_87 = arith.constant 0 : index
    %c0_88 = arith.constant 0 : index
    %197 = vector.load %arg11[%c0_87, %c0_88] : memref<8x128xf32, #tpu.memory_space<vmem>>, vector<8x128xf32>
    tpu.vector_store %arg11[%c0_87, %c0_88], %194 {strides = array<i32>} : memref<8x128xf32, #tpu.memory_space<vmem>>, vector<8x128xf32>,
    %c0_89 = arith.constant 0 : index
    %c0_90 = arith.constant 0 : index
    %198 = vector.load %arg10[%c0_89, %c0_90] : memref<8x128xf32, #tpu.memory_space<vmem>>, vector<8x128xf32>
    tpu.vector_store %arg10[%c0_89, %c0_90], %196 {strides = array<i32>} : memref<8x128xf32, #tpu.memory_space<vmem>>, vector<8x128xf32>,
    %199 = arith.index_cast %c4_i32 : i32 to index
    %c0_91 = arith.constant 0 : index
    %c0_92 = arith.constant 0 : index
    %200 = vector.load %arg6[%199, %c0_91, %c0_92] : memref<8x8x128xf32, #tpu.memory_space<vmem>>, vector<1x8x128xf32>
    %201 = vector.shape_cast %200 : vector<1x8x128xf32> to vector<8x128xf32>
    %202 = vector.shape_cast %196 : vector<8x128xf32> to vector<1x8x128xf32>
    tpu.vector_store %arg6[%199, %c0_91, %c0_92], %202 {strides = array<i32>} : memref<8x8x128xf32, #tpu.memory_space<vmem>>, vector<1x8x128xf32>,
    %c5_i32 = arith.constant 5 : i32
    %203 = arith.index_cast %c5_i32 : i32 to index
    %c0_93 = arith.constant 0 : index
    %c0_94 = arith.constant 0 : index
    %204 = vector.load %arg9[%203, %c0_93, %c0_94] : memref<8x8x512xf32, #tpu.memory_space<vmem>>, vector<1x8x512xf32>
    %205 = vector.shape_cast %204 : vector<1x8x512xf32> to vector<8x512xf32>
    %c0_95 = arith.constant 0 : index
    %c0_96 = arith.constant 0 : index
    %206 = vector.load %arg10[%c0_95, %c0_96] : memref<8x128xf32, #tpu.memory_space<vmem>>, vector<8x128xf32>
    %cst_97 = arith.constant dense<0.000000e+00> : vector<8x512xf32>
    %207 = tpu.matmul %206, %12, %cst_97 {dimension_numbers = #tpu.dot_dimension_numbers<[1], [0], [0], [1], [0, 0, 1, 1], [], []>} : vector<8x128xf32>, vector<128x512xf32>, vector<8x512xf32> -> vector<8x512xf32>
    %208 = arith.addf %205, %207 : vector<8x512xf32>
    %209 = vector.extract_strided_slice %208 {offsets = [0, 0], sizes = [8, 128], strides = [1, 1]} : vector<8x512xf32> to vector<8x128xf32>
    %210 = arith.negf %209 : vector<8x128xf32>
    %211 = math.exp %210 : vector<8x128xf32>
    %cst_98 = arith.constant 1.000000e+00 : f32
    %212 = vector.broadcast %cst_98 : f32 to vector<8x128xf32>
    %213 = arith.addf %212, %211 : vector<8x128xf32>
    %214 = arith.divf %212, %213 : vector<8x128xf32>
    %215 = vector.extract_strided_slice %208 {offsets = [0, 128], sizes = [8, 128], strides = [1, 1]} : vector<8x512xf32> to vector<8x128xf32>
    %216 = arith.negf %215 : vector<8x128xf32>
    %217 = math.exp %216 : vector<8x128xf32>
    %cst_99 = arith.constant 1.000000e+00 : f32
    %218 = vector.broadcast %cst_99 : f32 to vector<8x128xf32>
    %219 = arith.addf %218, %217 : vector<8x128xf32>
    %220 = arith.divf %218, %219 : vector<8x128xf32>
    %221 = vector.extract_strided_slice %208 {offsets = [0, 256], sizes = [8, 128], strides = [1, 1]} : vector<8x512xf32> to vector<8x128xf32>
    %222 = arith.negf %221 : vector<8x128xf32>
    %223 = math.exp %222 : vector<8x128xf32>
    %cst_100 = arith.constant 1.000000e+00 : f32
    %224 = vector.broadcast %cst_100 : f32 to vector<8x128xf32>
    %225 = arith.addf %224, %223 : vector<8x128xf32>
    %226 = arith.divf %224, %225 : vector<8x128xf32>
    %227 = vector.extract_strided_slice %208 {offsets = [0, 384], sizes = [8, 128], strides = [1, 1]} : vector<8x512xf32> to vector<8x128xf32>
    %228 = math.tanh %227 : vector<8x128xf32>
    %c0_101 = arith.constant 0 : index
    %c0_102 = arith.constant 0 : index
    %229 = vector.load %arg11[%c0_101, %c0_102] : memref<8x128xf32, #tpu.memory_space<vmem>>, vector<8x128xf32>
    %230 = arith.mulf %229, %220 : vector<8x128xf32>
    %231 = arith.mulf %214, %228 : vector<8x128xf32>
    %232 = arith.addf %230, %231 : vector<8x128xf32>
    %233 = math.tanh %232 : vector<8x128xf32>
    %234 = arith.mulf %226, %233 : vector<8x128xf32>
    %c0_103 = arith.constant 0 : index
    %c0_104 = arith.constant 0 : index
    %235 = vector.load %arg11[%c0_103, %c0_104] : memref<8x128xf32, #tpu.memory_space<vmem>>, vector<8x128xf32>
    tpu.vector_store %arg11[%c0_103, %c0_104], %232 {strides = array<i32>} : memref<8x128xf32, #tpu.memory_space<vmem>>, vector<8x128xf32>,
    %c0_105 = arith.constant 0 : index
    %c0_106 = arith.constant 0 : index
    %236 = vector.load %arg10[%c0_105, %c0_106] : memref<8x128xf32, #tpu.memory_space<vmem>>, vector<8x128xf32>
    tpu.vector_store %arg10[%c0_105, %c0_106], %234 {strides = array<i32>} : memref<8x128xf32, #tpu.memory_space<vmem>>, vector<8x128xf32>,
    %237 = arith.index_cast %c5_i32 : i32 to index
    %c0_107 = arith.constant 0 : index
    %c0_108 = arith.constant 0 : index
    %238 = vector.load %arg6[%237, %c0_107, %c0_108] : memref<8x8x128xf32, #tpu.memory_space<vmem>>, vector<1x8x128xf32>
    %239 = vector.shape_cast %238 : vector<1x8x128xf32> to vector<8x128xf32>
    %240 = vector.shape_cast %234 : vector<8x128xf32> to vector<1x8x128xf32>
    tpu.vector_store %arg6[%237, %c0_107, %c0_108], %240 {strides = array<i32>} : memref<8x8x128xf32, #tpu.memory_space<vmem>>, vector<1x8x128xf32>,
    %c6_i32 = arith.constant 6 : i32
    %241 = arith.index_cast %c6_i32 : i32 to index
    %c0_109 = arith.constant 0 : index
    %c0_110 = arith.constant 0 : index
    %242 = vector.load %arg9[%241, %c0_109, %c0_110] : memref<8x8x512xf32, #tpu.memory_space<vmem>>, vector<1x8x512xf32>
    %243 = vector.shape_cast %242 : vector<1x8x512xf32> to vector<8x512xf32>
    %c0_111 = arith.constant 0 : index
    %c0_112 = arith.constant 0 : index
    %244 = vector.load %arg10[%c0_111, %c0_112] : memref<8x128xf32, #tpu.memory_space<vmem>>, vector<8x128xf32>
    %cst_113 = arith.constant dense<0.000000e+00> : vector<8x512xf32>
    %245 = tpu.matmul %244, %12, %cst_113 {dimension_numbers = #tpu.dot_dimension_numbers<[1], [0], [0], [1], [0, 0, 1, 1], [], []>} : vector<8x128xf32>, vector<128x512xf32>, vector<8x512xf32> -> vector<8x512xf32>
    %246 = arith.addf %243, %245 : vector<8x512xf32>
    %247 = vector.extract_strided_slice %246 {offsets = [0, 0], sizes = [8, 128], strides = [1, 1]} : vector<8x512xf32> to vector<8x128xf32>
    %248 = arith.negf %247 : vector<8x128xf32>
    %249 = math.exp %248 : vector<8x128xf32>
    %cst_114 = arith.constant 1.000000e+00 : f32
    %250 = vector.broadcast %cst_114 : f32 to vector<8x128xf32>
    %251 = arith.addf %250, %249 : vector<8x128xf32>
    %252 = arith.divf %250, %251 : vector<8x128xf32>
    %253 = vector.extract_strided_slice %246 {offsets = [0, 128], sizes = [8, 128], strides = [1, 1]} : vector<8x512xf32> to vector<8x128xf32>
    %254 = arith.negf %253 : vector<8x128xf32>
    %255 = math.exp %254 : vector<8x128xf32>
    %cst_115 = arith.constant 1.000000e+00 : f32
    %256 = vector.broadcast %cst_115 : f32 to vector<8x128xf32>
    %257 = arith.addf %256, %255 : vector<8x128xf32>
    %258 = arith.divf %256, %257 : vector<8x128xf32>
    %259 = vector.extract_strided_slice %246 {offsets = [0, 256], sizes = [8, 128], strides = [1, 1]} : vector<8x512xf32> to vector<8x128xf32>
    %260 = arith.negf %259 : vector<8x128xf32>
    %261 = math.exp %260 : vector<8x128xf32>
    %cst_116 = arith.constant 1.000000e+00 : f32
    %262 = vector.broadcast %cst_116 : f32 to vector<8x128xf32>
    %263 = arith.addf %262, %261 : vector<8x128xf32>
    %264 = arith.divf %262, %263 : vector<8x128xf32>
    %265 = vector.extract_strided_slice %246 {offsets = [0, 384], sizes = [8, 128], strides = [1, 1]} : vector<8x512xf32> to vector<8x128xf32>
    %266 = math.tanh %265 : vector<8x128xf32>
    %c0_117 = arith.constant 0 : index
    %c0_118 = arith.constant 0 : index
    %267 = vector.load %arg11[%c0_117, %c0_118] : memref<8x128xf32, #tpu.memory_space<vmem>>, vector<8x128xf32>
    %268 = arith.mulf %267, %258 : vector<8x128xf32>
    %269 = arith.mulf %252, %266 : vector<8x128xf32>
    %270 = arith.addf %268, %269 : vector<8x128xf32>
    %271 = math.tanh %270 : vector<8x128xf32>
    %272 = arith.mulf %264, %271 : vector<8x128xf32>
    %c0_119 = arith.constant 0 : index
    %c0_120 = arith.constant 0 : index
    %273 = vector.load %arg11[%c0_119, %c0_120] : memref<8x128xf32, #tpu.memory_space<vmem>>, vector<8x128xf32>
    tpu.vector_store %arg11[%c0_119, %c0_120], %270 {strides = array<i32>} : memref<8x128xf32, #tpu.memory_space<vmem>>, vector<8x128xf32>,
    %c0_121 = arith.constant 0 : index
    %c0_122 = arith.constant 0 : index
    %274 = vector.load %arg10[%c0_121, %c0_122] : memref<8x128xf32, #tpu.memory_space<vmem>>, vector<8x128xf32>
    tpu.vector_store %arg10[%c0_121, %c0_122], %272 {strides = array<i32>} : memref<8x128xf32, #tpu.memory_space<vmem>>, vector<8x128xf32>,
    %275 = arith.index_cast %c6_i32 : i32 to index
    %c0_123 = arith.constant 0 : index
    %c0_124 = arith.constant 0 : index
    %276 = vector.load %arg6[%275, %c0_123, %c0_124] : memref<8x8x128xf32, #tpu.memory_space<vmem>>, vector<1x8x128xf32>
    %277 = vector.shape_cast %276 : vector<1x8x128xf32> to vector<8x128xf32>
    %278 = vector.shape_cast %272 : vector<8x128xf32> to vector<1x8x128xf32>
    tpu.vector_store %arg6[%275, %c0_123, %c0_124], %278 {strides = array<i32>} : memref<8x8x128xf32, #tpu.memory_space<vmem>>, vector<1x8x128xf32>,
    %c7_i32 = arith.constant 7 : i32
    %279 = arith.index_cast %c7_i32 : i32 to index
    %c0_125 = arith.constant 0 : index
    %c0_126 = arith.constant 0 : index
    %280 = vector.load %arg9[%279, %c0_125, %c0_126] : memref<8x8x512xf32, #tpu.memory_space<vmem>>, vector<1x8x512xf32>
    %281 = vector.shape_cast %280 : vector<1x8x512xf32> to vector<8x512xf32>
    %c0_127 = arith.constant 0 : index
    %c0_128 = arith.constant 0 : index
    %282 = vector.load %arg10[%c0_127, %c0_128] : memref<8x128xf32, #tpu.memory_space<vmem>>, vector<8x128xf32>
    %cst_129 = arith.constant dense<0.000000e+00> : vector<8x512xf32>
    %283 = tpu.matmul %282, %12, %cst_129 {dimension_numbers = #tpu.dot_dimension_numbers<[1], [0], [0], [1], [0, 0, 1, 1], [], []>} : vector<8x128xf32>, vector<128x512xf32>, vector<8x512xf32> -> vector<8x512xf32>
    %284 = arith.addf %281, %283 : vector<8x512xf32>
    %285 = vector.extract_strided_slice %284 {offsets = [0, 0], sizes = [8, 128], strides = [1, 1]} : vector<8x512xf32> to vector<8x128xf32>
    %286 = arith.negf %285 : vector<8x128xf32>
    %287 = math.exp %286 : vector<8x128xf32>
    %cst_130 = arith.constant 1.000000e+00 : f32
    %288 = vector.broadcast %cst_130 : f32 to vector<8x128xf32>
    %289 = arith.addf %288, %287 : vector<8x128xf32>
    %290 = arith.divf %288, %289 : vector<8x128xf32>
    %291 = vector.extract_strided_slice %284 {offsets = [0, 128], sizes = [8, 128], strides = [1, 1]} : vector<8x512xf32> to vector<8x128xf32>
    %292 = arith.negf %291 : vector<8x128xf32>
    %293 = math.exp %292 : vector<8x128xf32>
    %cst_131 = arith.constant 1.000000e+00 : f32
    %294 = vector.broadcast %cst_131 : f32 to vector<8x128xf32>
    %295 = arith.addf %294, %293 : vector<8x128xf32>
    %296 = arith.divf %294, %295 : vector<8x128xf32>
    %297 = vector.extract_strided_slice %284 {offsets = [0, 256], sizes = [8, 128], strides = [1, 1]} : vector<8x512xf32> to vector<8x128xf32>
    %298 = arith.negf %297 : vector<8x128xf32>
    %299 = math.exp %298 : vector<8x128xf32>
    %cst_132 = arith.constant 1.000000e+00 : f32
    %300 = vector.broadcast %cst_132 : f32 to vector<8x128xf32>
    %301 = arith.addf %300, %299 : vector<8x128xf32>
    %302 = arith.divf %300, %301 : vector<8x128xf32>
    %303 = vector.extract_strided_slice %284 {offsets = [0, 384], sizes = [8, 128], strides = [1, 1]} : vector<8x512xf32> to vector<8x128xf32>
    %304 = math.tanh %303 : vector<8x128xf32>
    %c0_133 = arith.constant 0 : index
    %c0_134 = arith.constant 0 : index
    %305 = vector.load %arg11[%c0_133, %c0_134] : memref<8x128xf32, #tpu.memory_space<vmem>>, vector<8x128xf32>
    %306 = arith.mulf %305, %296 : vector<8x128xf32>
    %307 = arith.mulf %290, %304 : vector<8x128xf32>
    %308 = arith.addf %306, %307 : vector<8x128xf32>
    %309 = math.tanh %308 : vector<8x128xf32>
    %310 = arith.mulf %302, %309 : vector<8x128xf32>
    %c0_135 = arith.constant 0 : index
    %c0_136 = arith.constant 0 : index
    %311 = vector.load %arg11[%c0_135, %c0_136] : memref<8x128xf32, #tpu.memory_space<vmem>>, vector<8x128xf32>
    tpu.vector_store %arg11[%c0_135, %c0_136], %308 {strides = array<i32>} : memref<8x128xf32, #tpu.memory_space<vmem>>, vector<8x128xf32>,
    %c0_137 = arith.constant 0 : index
    %c0_138 = arith.constant 0 : index
    %312 = vector.load %arg10[%c0_137, %c0_138] : memref<8x128xf32, #tpu.memory_space<vmem>>, vector<8x128xf32>
    tpu.vector_store %arg10[%c0_137, %c0_138], %310 {strides = array<i32>} : memref<8x128xf32, #tpu.memory_space<vmem>>, vector<8x128xf32>,
    %313 = arith.index_cast %c7_i32 : i32 to index
    %c0_139 = arith.constant 0 : index
    %c0_140 = arith.constant 0 : index
    %314 = vector.load %arg6[%313, %c0_139, %c0_140] : memref<8x8x128xf32, #tpu.memory_space<vmem>>, vector<1x8x128xf32>
    %315 = vector.shape_cast %314 : vector<1x8x128xf32> to vector<8x128xf32>
    %316 = vector.shape_cast %310 : vector<8x128xf32> to vector<1x8x128xf32>
    tpu.vector_store %arg6[%313, %c0_139, %c0_140], %316 {strides = array<i32>} : memref<8x8x128xf32, #tpu.memory_space<vmem>>, vector<1x8x128xf32>,
    %c8_i32 = arith.constant 8 : i32
    %c0_i32_141 = arith.constant 0 : i32
    %317 = arith.cmpi eq, %arg1, %c0_i32_141 : i32
    %318 = arith.extui %317 : i1 to i32
    %c0_i32_142 = arith.constant 0 : i32
    %319 = arith.cmpi ne, %318, %c0_i32_142 : i32
    scf.if %319 {
      %c0_143 = arith.constant 0 : index
      %c0_144 = arith.constant 0 : index
      %320 = vector.load %arg10[%c0_143, %c0_144] : memref<8x128xf32, #tpu.memory_space<vmem>>, vector<8x128xf32>
      %c0_145 = arith.constant 0 : index
      %c0_146 = arith.constant 0 : index
      %321 = vector.load %arg7[%c0_145, %c0_146] : memref<8x128xf32, #tpu.memory_space<vmem>>, vector<8x128xf32>
      tpu.vector_store %arg7[%c0_145, %c0_146], %320 {strides = array<i32>} : memref<8x128xf32, #tpu.memory_space<vmem>>, vector<8x128xf32>,
      %c0_147 = arith.constant 0 : index
      %c0_148 = arith.constant 0 : index
      %322 = vector.load %arg11[%c0_147, %c0_148] : memref<8x128xf32, #tpu.memory_space<vmem>>, vector<8x128xf32>
      %c0_149 = arith.constant 0 : index
      %c0_150 = arith.constant 0 : index
      %323 = vector.load %arg8[%c0_149, %c0_150] : memref<8x128xf32, #tpu.memory_space<vmem>>, vector<8x128xf32>
      tpu.vector_store %arg8[%c0_149, %c0_150], %322 {strides = array<i32>} : memref<8x128xf32, #tpu.memory_space<vmem>>, vector<8x128xf32>,
    } else {
    }
    return
  }
  func.func @transform_0(%arg0: i32, %arg1: i32) -> (i32, i32, i32) {
    %c0_i32 = arith.constant 0 : i32
    %c0_i32_0 = arith.constant 0 : i32
    return %arg1, %arg0, %c0_i32 : i32, i32, i32
  }
  func.func @transform_1(%arg0: i32, %arg1: i32) -> (i32, i32) {
    %c0_i32 = arith.constant 0 : i32
    %c0_i32_0 = arith.constant 0 : i32
    %c0_i32_1 = arith.constant 0 : i32
    return %c0_i32, %c0_i32_0 : i32, i32
  }
  func.func @transform_2(%arg0: i32, %arg1: i32) -> (i32, i32) {
    %c0_i32 = arith.constant 0 : i32
    %c0_i32_0 = arith.constant 0 : i32
    %c0_i32_1 = arith.constant 0 : i32
    return %c0_i32, %c0_i32_0 : i32, i32
  }
  func.func @transform_3(%arg0: i32, %arg1: i32) -> (i32, i32) {
    %c0_i32 = arith.constant 0 : i32
    %c0_i32_0 = arith.constant 0 : i32
    %c0_i32_1 = arith.constant 0 : i32
    return %c0_i32, %c0_i32_0 : i32, i32
  }
  func.func @transform_4(%arg0: i32, %arg1: i32) -> (i32, i32, i32) {
    %c0_i32 = arith.constant 0 : i32
    %c0_i32_0 = arith.constant 0 : i32
    return %arg1, %arg0, %c0_i32 : i32, i32, i32
  }
  func.func @transform_5(%arg0: i32, %arg1: i32) -> (i32, i32) {
    %c0_i32 = arith.constant 0 : i32
    %c0_i32_0 = arith.constant 0 : i32
    return %arg0, %c0_i32 : i32, i32
  }
  func.func @transform_6(%arg0: i32, %arg1: i32) -> (i32, i32) {
    %c0_i32 = arith.constant 0 : i32
    %c0_i32_0 = arith.constant 0 : i32
    return %arg0, %c0_i32 : i32, i32
  }
}

</mosaic_0001>

<llo_original>
// kernel: tpu_custom_call.1
$region0: #{tpu_custom_call.1}
  #allocation0 [shape = 'u32[]', space=smem, size = 0x4, offset = 0x4, fixed_abs, tag = 'smem constant byte address 0x4 - core index']
  #allocation1 [shape = 'u32[144,128]{1,0:T(1,128)}', space=vmem, size = 0x12000, scoped, tag = 'internal scratch']
  #allocation2 [shape = 'f32[8,8,512]{2,1,0:T(8,128)}', space=vmem, size = 0x20000, scoped, tag = 'scratch operand']
  #allocation3 [shape = 'f32[8,128]{1,0:T(8,128)}', space=vmem, size = 0x1000, scoped, tag = 'scratch operand']
  #allocation4 [shape = 'f32[8,128]{1,0:T(8,128)}', space=vmem, size = 0x1000, scoped, tag = 'scratch operand']
  %s0 = inlined_call_operand.hbm [shape: f32[8,8,16], index: 0, kind: input, shape index: {}]
  %s1 = inlined_call_operand.hbm [shape: f32[16,512], index: 1, kind: input, shape index: {}]
  %s2 = inlined_call_operand.hbm [shape: f32[128,512], index: 2, kind: input, shape index: {}]
  %s3 = inlined_call_operand.vmem [shape: f32[1,512], index: 3, kind: input, shape index: {}]
  %s4 = inlined_call_operand.hbm [shape: f32[8,8,128], index: 4, kind: output, shape index: {0}]
  %s5 = inlined_call_operand.hbm [shape: f32[8,128], index: 5, kind: output, shape index: {1}]
  %s6 = inlined_call_operand.hbm [shape: f32[8,128], index: 6, kind: output, shape index: {2}]
  %7 = xla_tuple %s4, %s5, %s6
  %s8 = sld [smem:[#allocation0]]
  $region62: #{tpu_custom_call.1} parent=0
    _
  %s10 = ssub.s32 1, %s8
  %s11 = scalar_select 0, %s10, %s8
  $region1: #{tpu_custom_call.1} parent=0
    #allocation5 [shape = 'u8[32768]{0}', space=vmem, size = 0x8000, scoped, tag = 'input window, operand 0, single buffered']
    #allocation6 [shape = 's32[1]{0}', space=sflag, size = 0x4, scoped, tag = 'scoped memory for tpu_custom_call.1']
    #allocation7 [shape = 's32[1]{0}', space=sflag, size = 0x4, scoped, tag = 'scoped memory for tpu_custom_call.1']
    #allocation8 [shape = 'u8[32768]{0}', space=vmem, size = 0x8000, scoped, tag = 'input window, operand 1, single buffered']
    #allocation9 [shape = 's32[1]{0}', space=sflag, size = 0x4, scoped, tag = 'scoped memory for tpu_custom_call.1']
    #allocation10 [shape = 'u8[262144]{0}', space=vmem, size = 0x40000, scoped, tag = 'input window, operand 2, single buffered']
    #allocation11 [shape = 'u8[32768]{0}', space=vmem, size = 0x8000, scoped, tag = 'output window, operand 0, single buffered']
    #allocation12 [shape = 'u8[4096]{0}', space=vmem, size = 0x1000, scoped, tag = 'output window, operand 1, single buffered']
    #allocation13 [shape = 's32[1]{0}', space=sflag, size = 0x4, scoped, tag = 'scoped memory for tpu_custom_call.1']
    #allocation14 [shape = 'u8[4096]{0}', space=vmem, size = 0x1000, scoped, tag = 'output window, operand 2, single buffered']
    %12 = vsyncpa [#allocation6], 0
    %13 = vsyncpa [#allocation9], 0
    %14 = vsyncpa [#allocation7], 0
    %15 = vsyncpa [#allocation13], 0
    // Predicated region
    $region2: #{tpu_custom_call.1} parent=1 // pred_check
      _
    $region3: #{tpu_custom_call.1} parent=1 // pred_check_branch
      %17 = sbr.rel (0) target = $region5
    $region4: #{tpu_custom_call.1} parent=1 // pred_region
      %s19 = ssub.s32 1024, 1024
      %20 = vsyncadd [#allocation6], %s19
      %s21 = sshll.u32 [#allocation5], 4
      %s22 = int_to_ptr.vmem [resolvable:$true] %s21
      %27 = dma.hbm_to_vmem [thread:$0]  %s0, 1024, %s22, [#allocation6], 128, 128, 8
    $region5: #{tpu_custom_call.1} parent=1 // pred_fallthru
      _
    // Predicated region
    $region6: #{tpu_custom_call.1} parent=1 // pred_check
      _
    $region7: #{tpu_custom_call.1} parent=1 // pred_check_branch
      %29 = sbr.rel (0) target = $region9
    $region8: #{tpu_custom_call.1} parent=1 // pred_region
      %s31 = ssub.s32 1024, 1024
      %32 = vsyncadd [#allocation9], %s31
      %s33 = sshll.u32 [#allocation8], 4
      %s34 = int_to_ptr.vmem [resolvable:$true] %s33
      %39 = dma.hbm_to_vmem [thread:$0]  %s1, 1024, %s34, [#allocation9], 512, 512, 32
    $region9: #{tpu_custom_call.1} parent=1 // pred_fallthru
      _
    // Predicated region
    $region10: #{tpu_custom_call.1} parent=1 // pred_check
      _
    $region11: #{tpu_custom_call.1} parent=1 // pred_check_branch
      %41 = sbr.rel (0) target = $region13
    $region12: #{tpu_custom_call.1} parent=1 // pred_region
      %s43 = ssub.s32 8192, 8192
      %44 = vsyncadd [#allocation9], %s43
      %s45 = sshll.u32 [#allocation10], 4
      %s46 = int_to_ptr.vmem [resolvable:$true] %s45
      %51 = dma.hbm_to_vmem [thread:$0]  %s2, 8192, %s46, [#allocation9], 512, 512, 32
    $region13: #{tpu_custom_call.1} parent=1 // pred_fallthru
      _
    // Predicated region
    $region14: #{tpu_custom_call.1} parent=1 // pred_check
      _
    $region15: #{tpu_custom_call.1} parent=1 // pred_check_branch
      %53 = sbr.rel (0) target = $region17
    $region16: #{tpu_custom_call.1} parent=1 // pred_region
      _
    $region17: #{tpu_custom_call.1} parent=1 // pred_fallthru
      _
    // Predicated region
    $region18: #{tpu_custom_call.1} parent=1 // pred_check
      _
    $region19: #{tpu_custom_call.1} parent=1 // pred_check_branch
      %55 = sbr.rel (0) target = $region21
    $region20: #{tpu_custom_call.1} parent=1 // pred_region
      %56 = dma.done [#allocation6], 1024
    $region21: #{tpu_custom_call.1} parent=1 // pred_fallthru
      _
    // Predicated region
    $region22: #{tpu_custom_call.1} parent=1 // pred_check
      _
    $region23: #{tpu_custom_call.1} parent=1 // pred_check_branch
      %58 = sbr.rel (0) target = $region25
    $region24: #{tpu_custom_call.1} parent=1 // pred_region
      %59 = dma.done [#allocation9], 1024
    $region25: #{tpu_custom_call.1} parent=1 // pred_fallthru
      _
    // Predicated region
    $region26: #{tpu_custom_call.1} parent=1 // pred_check
      _
    $region27: #{tpu_custom_call.1} parent=1 // pred_check_branch
      %61 = sbr.rel (0) target = $region29
    $region28: #{tpu_custom_call.1} parent=1 // pred_region
      %62 = dma.done [#allocation9], 8192
    $region29: #{tpu_custom_call.1} parent=1 // pred_fallthru
      _
    %p63 = scmp.eq.s32.totalorder 0, 0
    // Predicated region
    $region30: #{tpu_custom_call.1} parent=1 // pred_check
      %p64 = pneg %p63
    $region31: #{tpu_custom_call.1} parent=1 // pred_check_branch
      %66 = sbr.rel (%p64) target = $region33
    $region32: #{tpu_custom_call.1} parent=1 // pred_region
      %67 = vst [vmem:[#allocation3] sm:$0xff] 0.0
      %68 = vst [vmem:[#allocation4] sm:$0xff] 0.0
    $region33: #{tpu_custom_call.1} parent=1 // pred_fallthru
      _
    %v69 = vld [vmem:[#allocation5] sm:$0xff]
    %v70 = vld [vmem:[#allocation5 + $0x8] sm:$0xff]
    %v71 = vld [vmem:[#allocation5 + $0x10] sm:$0xff]
    %v72 = vld [vmem:[#allocation5 + $0x18] sm:$0xff]
    %v73 = vld [vmem:[#allocation5 + $0x20] sm:$0xff]
    %v74 = vld [vmem:[#allocation5 + $0x28] sm:$0xff]
    %v75 = vld [vmem:[#allocation5 + $0x30] sm:$0xff]
    %v76 = vld [vmem:[#allocation5 + $0x38] sm:$0xff]
    %v77 = vld [vmem:[#allocation8] sm:$0xff]
    %v78 = vld [vmem:[#allocation8 + $0x8] sm:$0xff]
    %v79 = vld [vmem:[#allocation8 + $0x10] sm:$0xff]
    %v80 = vld [vmem:[#allocation8 + $0x18] sm:$0xff]
    %v81 = vld [vmem:[#allocation8 + $0x20] sm:$0xff]
    %v82 = vld [vmem:[#allocation8 + $0x28] sm:$0xff]
    %v83 = vld [vmem:[#allocation8 + $0x30] sm:$0xff]
    %v84 = vld [vmem:[#allocation8 + $0x38] sm:$0xff]
    %v85 = vld [vmem:[%s3] sm:$0xf]
    %v87 = vlaneseq
    %v88 = vshrl.u32 %v87, 7
    %v89 = vsub.s32 0, %v88
    %v90 = vrot.slane %v85, %v89
    %v91 = vlaneseq
    %v92 = vshrl.u32 %v91, 7
    %v93 = vsub.s32 1, %v92
    %v94 = vrot.slane %v85, %v93
    %v95 = vlaneseq
    %v96 = vshrl.u32 %v95, 7
    %v97 = vsub.s32 2, %v96
    %v98 = vrot.slane %v85, %v97
    %v99 = vlaneseq
    %v100 = vshrl.u32 %v99, 7
    %v101 = vsub.s32 3, %v100
    %v102 = vrot.slane %v85, %v101
    %vm107 = vcmask 130048
    %v109 = vsel %vm107, %v69, 0
    %v112 = vsel %vm107, %v70, 0
    %v115 = vsel %vm107, %v71, 0
    %v118 = vsel %vm107, %v72, 0
    %v121 = vsel %vm107, %v73, 0
    %v124 = vsel %vm107, %v74, 0
    %v127 = vsel %vm107, %v75, 0
    %v130 = vsel %vm107, %v76, 0
    %132 = vmatprep.subr.mxu0 %v78
    %133 = vmatpush1.msra.mxu0 %v77
    %134 = vmatprep.subr.mxu0 %v82
    %135 = vmatpush1.msra.mxu0 %v81
    %136 = vmatprep.subr.mxu0 0.0
    %137 = vmatpush1.msra.mxu0 0.0
    %138 = vmatprep.subr.mxu0 0.0
    %139 = vmatpush1.msra.mxu0 0.0
    %140 = vmatprep.subr.mxu0 0.0
    %141 = vmatpush1.msra.mxu0 0.0
    %142 = vmatprep.subr.mxu0 0.0
    %143 = vmatpush1.msra.mxu0 0.0
    %144 = vmatprep.subr.mxu0 0.0
    %145 = vmatpush1.msra.mxu0 0.0
    %146 = vmatprep.subr.mxu0 0.0
    %147 = vmatpush1.msra.mxu0 0.0
    %148 = vmatprep.subr.mxu0 0.0
    %149 = vmatpush1.msra.mxu0 0.0
    %150 = vmatprep.subr.mxu0 0.0
    %151 = vmatpush1.msra.mxu0 0.0
    %152 = vmatprep.subr.mxu0 0.0
    %153 = vmatpush1.msra.mxu0 0.0
    %154 = vmatprep.subr.mxu0 0.0
    %155 = vmatpush1.msra.mxu0 0.0
    %156 = vmatprep.subr.mxu0 0.0
    %157 = vmatpush1.msra.mxu0 0.0
    %158 = vmatprep.subr.mxu0 0.0
    %159 = vmatpush1.msra.mxu0 0.0
    %160 = vmatprep.subr.mxu0 0.0
    %161 = vmatpush1.msra.mxu0 0.0
    %162 = vmatprep.subr.mxu0 0.0
    %163 = vmatpush1.msra.mxu0 0.0
    %164 = vmatprep.subr.mxu0 0.0
    %165 = vmatpush1.msra.mxu0 0.0
    %166 = vmatprep.subr.mxu0 0.0
    %167 = vmatpush1.msra.mxu0 0.0
    %168 = vmatprep.subr.mxu0 0.0
    %169 = vmatpush1.msra.mxu0 0.0
    %170 = vmatprep.subr.mxu0 0.0
    %171 = vmatpush1.msra.mxu0 0.0
    %172 = vmatprep.subr.mxu0 0.0
    %173 = vmatpush1.msra.mxu0 0.0
    %174 = vmatprep.subr.mxu0 0.0
    %175 = vmatpush1.msra.mxu0 0.0
    %176 = vmatprep.subr.mxu0 0.0
    %177 = vmatpush1.msra.mxu0 0.0
    %178 = vmatprep.subr.mxu0 0.0
    %179 = vmatpush1.msra.mxu0 0.0
    %180 = vmatprep.subr.mxu0 0.0
    %181 = vmatpush1.msra.mxu0 0.0
    %182 = vmatprep.subr.mxu0 0.0
    %183 = vmatpush1.msra.mxu0 0.0
    %184 = vmatprep.subr.mxu0 0.0
    %185 = vmatpush1.msra.mxu0 0.0
    %186 = vmatprep.subr.mxu0 0.0
    %187 = vmatpush1.msra.mxu0 0.0
    %188 = vmatprep.subr.mxu0 0.0
    %189 = vmatpush1.msra.mxu0 0.0
    %190 = vmatprep.subr.mxu0 0.0
    %191 = vmatpush1.msra.mxu0 0.0
    %192 = vmatprep.subr.mxu0 0.0
    %193 = vmatpush1.msra.mxu0 0.0
    %194 = vmatprep.subr.mxu0 0.0
    %195 = vmatpush1.msra.mxu0 0.0
    %196 = vmatprep.mubr.f32.mxu0 0.0
    %197 = vmatmul.mubr.f32.gmra.mrb[0].mxu0 %v109
    %v198 = vpop.f32.mrb[0].mxu0
    %v199 = vadd.f32 %v90, %v198
    %v200 = vpop.f32.mrb[0].mxu0
    %v201 = vadd.f32 %v94, %v200
    %202 = vmatprep.mubr.f32.mxu0 0.0
    %203 = vmatmul.mubr.f32.gmra.mrb[0].mxu0 %v112
    %v204 = vpop.f32.mrb[0].mxu0
    %v205 = vadd.f32 %v90, %v204
    %v206 = vpop.f32.mrb[0].mxu0
    %v207 = vadd.f32 %v94, %v206
    %208 = vmatprep.mubr.f32.mxu0 0.0
    %209 = vmatmul.mubr.f32.gmra.mrb[0].mxu0 %v115
    %v210 = vpop.f32.mrb[0].mxu0
    %v211 = vadd.f32 %v90, %v210
    %v212 = vpop.f32.mrb[0].mxu0
    %v213 = vadd.f32 %v94, %v212
    %214 = vmatprep.mubr.f32.mxu0 0.0
    %215 = vmatmul.mubr.f32.gmra.mrb[0].mxu0 %v118
    %v216 = vpop.f32.mrb[0].mxu0
    %v217 = vadd.f32 %v90, %v216
    %v218 = vpop.f32.mrb[0].mxu0
    %v219 = vadd.f32 %v94, %v218
    %220 = vmatprep.mubr.f32.mxu0 0.0
    %221 = vmatmul.mubr.f32.gmra.mrb[0].mxu0 %v121
    %v222 = vpop.f32.mrb[0].mxu0
    %v223 = vadd.f32 %v90, %v222
    %v224 = vpop.f32.mrb[0].mxu0
    %v225 = vadd.f32 %v94, %v224
    %226 = vmatprep.mubr.f32.mxu0 0.0
    %227 = vmatmul.mubr.f32.gmra.mrb[0].mxu0 %v124
    %v228 = vpop.f32.mrb[0].mxu0
    %v229 = vadd.f32 %v90, %v228
    %v230 = vpop.f32.mrb[0].mxu0
    %v231 = vadd.f32 %v94, %v230
    %232 = vmatprep.mubr.f32.mxu0 0.0
    %233 = vmatmul.mubr.f32.gmra.mrb[0].mxu0 %v127
    %v234 = vpop.f32.mrb[0].mxu0
    %v235 = vadd.f32 %v90, %v234
    %v236 = vpop.f32.mrb[0].mxu0
    %v237 = vadd.f32 %v94, %v236
    %238 = vmatprep.mubr.f32.mxu0 0.0
    %239 = vmatmul.mubr.f32.gmra.mrb[0].mxu0 %v130
    %v240 = vpop.f32.mrb[0].mxu0
    %v241 = vadd.f32 %v90, %v240
    %v242 = vpop.f32.mrb[0].mxu0
    %v243 = vadd.f32 %v94, %v242
    %244 = vdwg.mxu0
    %245 = vmatprep.subr.mxu0 %v80
    %246 = vmatpush1.msra.mxu0 %v79
    %247 = vmatprep.subr.mxu0 %v84
    %248 = vmatpush1.msra.mxu0 %v83
    %249 = vmatprep.subr.mxu0 0.0
    %250 = vmatpush1.msra.mxu0 0.0
    %251 = vmatprep.subr.mxu0 0.0
    %252 = vmatpush1.msra.mxu0 0.0
    %253 = vmatprep.subr.mxu0 0.0
    %254 = vmatpush1.msra.mxu0 0.0
    %255 = vmatprep.subr.mxu0 0.0
    %256 = vmatpush1.msra.mxu0 0.0
    %257 = vmatprep.subr.mxu0 0.0
    %258 = vmatpush1.msra.mxu0 0.0
    %259 = vmatprep.subr.mxu0 0.0
    %260 = vmatpush1.msra.mxu0 0.0
    %261 = vmatprep.subr.mxu0 0.0
    %262 = vmatpush1.msra.mxu0 0.0
    %263 = vmatprep.subr.mxu0 0.0
    %264 = vmatpush1.msra.mxu0 0.0
    %265 = vmatprep.subr.mxu0 0.0
    %266 = vmatpush1.msra.mxu0 0.0
    %267 = vmatprep.subr.mxu0 0.0
    %268 = vmatpush1.msra.mxu0 0.0
    %269 = vmatprep.subr.mxu0 0.0
    %270 = vmatpush1.msra.mxu0 0.0
    %271 = vmatprep.subr.mxu0 0.0
    %272 = vmatpush1.msra.mxu0 0.0
    %273 = vmatprep.subr.mxu0 0.0
    %274 = vmatpush1.msra.mxu0 0.0
    %275 = vmatprep.subr.mxu0 0.0
    %276 = vmatpush1.msra.mxu0 0.0
    %277 = vmatprep.subr.mxu0 0.0
    %278 = vmatpush1.msra.mxu0 0.0
    %279 = vmatprep.subr.mxu0 0.0
    %280 = vmatpush1.msra.mxu0 0.0
    %281 = vmatprep.subr.mxu0 0.0
    %282 = vmatpush1.msra.mxu0 0.0
    %283 = vmatprep.subr.mxu0 0.0
    %284 = vmatpush1.msra.mxu0 0.0
    %285 = vmatprep.subr.mxu0 0.0
    %286 = vmatpush1.msra.mxu0 0.0
    %287 = vmatprep.subr.mxu0 0.0
    %288 = vmatpush1.msra.mxu0 0.0
    %289 = vmatprep.subr.mxu0 0.0
    %290 = vmatpush1.msra.mxu0 0.0
    %291 = vmatprep.subr.mxu0 0.0
    %292 = vmatpush1.msra.mxu0 0.0
    %293 = vmatprep.subr.mxu0 0.0
    %294 = vmatpush1.msra.mxu0 0.0
    %295 = vmatprep.subr.mxu0 0.0
    %296 = vmatpush1.msra.mxu0 0.0
    %297 = vmatprep.subr.mxu0 0.0
    %298 = vmatpush1.msra.mxu0 0.0
    %299 = vmatprep.subr.mxu0 0.0
    %300 = vmatpush1.msra.mxu0 0.0
    %301 = vmatprep.subr.mxu0 0.0
    %302 = vmatpush1.msra.mxu0 0.0
    %303 = vmatprep.subr.mxu0 0.0
    %304 = vmatpush1.msra.mxu0 0.0
    %305 = vmatprep.subr.mxu0 0.0
    %306 = vmatpush1.msra.mxu0 0.0
    %307 = vmatprep.subr.mxu0 0.0
    %308 = vmatpush1.msra.mxu0 0.0
    %309 = vmatprep.mubr.f32.mxu0 0.0
    %310 = vmatmul.mubr.f32.gmra.mrb[0].mxu0 %v109
    %v311 = vpop.f32.mrb[0].mxu0
    %v312 = vadd.f32 %v98, %v311
    %v313 = vpop.f32.mrb[0].mxu0
    %v314 = vadd.f32 %v102, %v313
    %315 = vmatprep.mubr.f32.mxu0 0.0
    %316 = vmatmul.mubr.f32.gmra.mrb[0].mxu0 %v112
    %v317 = vpop.f32.mrb[0].mxu0
    %v318 = vadd.f32 %v98, %v317
    %v319 = vpop.f32.mrb[0].mxu0
    %v320 = vadd.f32 %v102, %v319
    %321 = vmatprep.mubr.f32.mxu0 0.0
    %322 = vmatmul.mubr.f32.gmra.mrb[0].mxu0 %v115
    %v323 = vpop.f32.mrb[0].mxu0
    %v324 = vadd.f32 %v98, %v323
    %v325 = vpop.f32.mrb[0].mxu0
    %v326 = vadd.f32 %v102, %v325
    %327 = vmatprep.mubr.f32.mxu0 0.0
    %328 = vmatmul.mubr.f32.gmra.mrb[0].mxu0 %v118
    %v329 = vpop.f32.mrb[0].mxu0
    %v330 = vadd.f32 %v98, %v329
    %v331 = vpop.f32.mrb[0].mxu0
    %v332 = vadd.f32 %v102, %v331
    %333 = vmatprep.mubr.f32.mxu0 0.0
    %334 = vmatmul.mubr.f32.gmra.mrb[0].mxu0 %v121
    %v335 = vpop.f32.mrb[0].mxu0
    %v336 = vadd.f32 %v98, %v335
    %v337 = vpop.f32.mrb[0].mxu0
    %v338 = vadd.f32 %v102, %v337
    %339 = vmatprep.mubr.f32.mxu0 0.0
    %340 = vmatmul.mubr.f32.gmra.mrb[0].mxu0 %v124
    %v341 = vpop.f32.mrb[0].mxu0
    %v342 = vadd.f32 %v98, %v341
    %v343 = vpop.f32.mrb[0].mxu0
    %v344 = vadd.f32 %v102, %v343
    %345 = vmatprep.mubr.f32.mxu0 0.0
    %346 = vmatmul.mubr.f32.gmra.mrb[0].mxu0 %v127
    %v347 = vpop.f32.mrb[0].mxu0
    %v348 = vadd.f32 %v98, %v347
    %v349 = vpop.f32.mrb[0].mxu0
    %v350 = vadd.f32 %v102, %v349
    %351 = vmatprep.mubr.f32.mxu0 0.0
    %352 = vmatmul.mubr.f32.gmra.mrb[0].mxu0 %v130
    %v353 = vpop.f32.mrb[0].mxu0
    %v354 = vadd.f32 %v98, %v353
    %v355 = vpop.f32.mrb[0].mxu0
    %v356 = vadd.f32 %v102, %v355
    %357 = vdwg.mxu0
    %358 = vst [vmem:[#allocation2] sm:$0xff] %v199
    %359 = vst [vmem:[#allocation2 + $0x8] sm:$0xff] %v201
    %360 = vst [vmem:[#allocation2 + $0x10] sm:$0xff] %v312
    %361 = vst [vmem:[#allocation2 + $0x18] sm:$0xff] %v314
    %362 = vst [vmem:[#allocation2 + $0x20] sm:$0xff] %v205
    %363 = vst [vmem:[#allocation2 + $0x28] sm:$0xff] %v207
    %364 = vst [vmem:[#allocation2 + $0x30] sm:$0xff] %v318
    %365 = vst [vmem:[#allocation2 + $0x38] sm:$0xff] %v320
    %366 = vst [vmem:[#allocation2 + $0x40] sm:$0xff] %v211
    %367 = vst [vmem:[#allocation2 + $0x48] sm:$0xff] %v213
    %368 = vst [vmem:[#allocation2 + $0x50] sm:$0xff] %v324
    %369 = vst [vmem:[#allocation2 + $0x58] sm:$0xff] %v326
    %370 = vst [vmem:[#allocation2 + $0x60] sm:$0xff] %v217
    %371 = vst [vmem:[#allocation2 + $0x68] sm:$0xff] %v219
    %372 = vst [vmem:[#allocation2 + $0x70] sm:$0xff] %v330
    %373 = vst [vmem:[#allocation2 + $0x78] sm:$0xff] %v332
    %374 = vst [vmem:[#allocation2 + $0x80] sm:$0xff] %v223
    %375 = vst [vmem:[#allocation2 + $0x88] sm:$0xff] %v225
    %376 = vst [vmem:[#allocation2 + $0x90] sm:$0xff] %v336
    %377 = vst [vmem:[#allocation2 + $0x98] sm:$0xff] %v338
    %378 = vst [vmem:[#allocation2 + $0xa0] sm:$0xff] %v229
    %379 = vst [vmem:[#allocation2 + $0xa8] sm:$0xff] %v231
    %380 = vst [vmem:[#allocation2 + $0xb0] sm:$0xff] %v342
    %381 = vst [vmem:[#allocation2 + $0xb8] sm:$0xff] %v344
    %382 = vst [vmem:[#allocation2 + $0xc0] sm:$0xff] %v235
    %383 = vst [vmem:[#allocation2 + $0xc8] sm:$0xff] %v237
    %384 = vst [vmem:[#allocation2 + $0xd0] sm:$0xff] %v348
    %385 = vst [vmem:[#allocation2 + $0xd8] sm:$0xff] %v350
    %386 = vst [vmem:[#allocation2 + $0xe0] sm:$0xff] %v241
    %387 = vst [vmem:[#allocation2 + $0xe8] sm:$0xff] %v243
    %388 = vst [vmem:[#allocation2 + $0xf0] sm:$0xff] %v354
    %389 = vst [vmem:[#allocation2 + $0xf8] sm:$0xff] %v356
    %v390 = vld [vmem:[#allocation10] sm:$0xff]
    %v391 = vld [vmem:[#allocation10 + $0x8] sm:$0xff]
    %v392 = vld [vmem:[#allocation10 + $0x10] sm:$0xff]
    %v393 = vld [vmem:[#allocation10 + $0x18] sm:$0xff]
    %v394 = vld [vmem:[#allocation10 + $0x20] sm:$0xff]
    %v395 = vld [vmem:[#allocation10 + $0x28] sm:$0xff]
    %v396 = vld [vmem:[#allocation10 + $0x30] sm:$0xff]
    %v397 = vld [vmem:[#allocation10 + $0x38] sm:$0xff]
    %v398 = vld [vmem:[#allocation10 + $0x40] sm:$0xff]
    %v399 = vld [vmem:[#allocation10 + $0x48] sm:$0xff]
    %v400 = vld [vmem:[#allocation10 + $0x50] sm:$0xff]
    %v401 = vld [vmem:[#allocation10 + $0x58] sm:$0xff]
    %v402 = vld [vmem:[#allocation10 + $0x60] sm:$0xff]
    %v403 = vld [vmem:[#allocation10 + $0x68] sm:$0xff]
    %v404 = vld [vmem:[#allocation10 + $0x70] sm:$0xff]
    %v405 = vld [vmem:[#allocation10 + $0x78] sm:$0xff]
    %v406 = vld [vmem:[#allocation10 + $0x80] sm:$0xff]
    %v407 = vld [vmem:[#allocation10 + $0x88] sm:$0xff]
    %v408 = vld [vmem:[#allocation10 + $0x90] sm:$0xff]
    %v409 = vld [vmem:[#allocation10 + $0x98] sm:$0xff]
    %v410 = vld [vmem:[#allocation10 + $0xa0] sm:$0xff]
    %v411 = vld [vmem:[#allocation10 + $0xa8] sm:$0xff]
    %v412 = vld [vmem:[#allocation10 + $0xb0] sm:$0xff]
    %v413 = vld [vmem:[#allocation10 + $0xb8] sm:$0xff]
    %v414 = vld [vmem:[#allocation10 + $0xc0] sm:$0xff]
    %v415 = vld [vmem:[#allocation10 + $0xc8] sm:$0xff]
    %v416 = vld [vmem:[#allocation10 + $0xd0] sm:$0xff]
    %v417 = vld [vmem:[#allocation10 + $0xd8] sm:$0xff]
    %v418 = vld [vmem:[#allocation10 + $0xe0] sm:$0xff]
    %v419 = vld [vmem:[#allocation10 + $0xe8] sm:$0xff]
    %v420 = vld [vmem:[#allocation10 + $0xf0] sm:$0xff]
    %v421 = vld [vmem:[#allocation10 + $0xf8] sm:$0xff]
    %v422 = vld [vmem:[#allocation10 + $0x100] sm:$0xff]
    %v423 = vld [vmem:[#allocation10 + $0x108] sm:$0xff]
    %v424 = vld [vmem:[#allocation10 + $0x110] sm:$0xff]
    %v425 = vld [vmem:[#allocation10 + $0x118] sm:$0xff]
    %v426 = vld [vmem:[#allocation10 + $0x120] sm:$0xff]
    %v427 = vld [vmem:[#allocation10 + $0x128] sm:$0xff]
    %v428 = vld [vmem:[#allocation10 + $0x130] sm:$0xff]
    %v429 = vld [vmem:[#allocation10 + $0x138] sm:$0xff]
    %v430 = vld [vmem:[#allocation10 + $0x140] sm:$0xff]
    %v431 = vld [vmem:[#allocation10 + $0x148] sm:$0xff]
    %v432 = vld [vmem:[#allocation10 + $0x150] sm:$0xff]
    %v433 = vld [vmem:[#allocation10 + $0x158] sm:$0xff]
    %v434 = vld [vmem:[#allocation10 + $0x160] sm:$0xff]
    %v435 = vld [vmem:[#allocation10 + $0x168] sm:$0xff]
    %v436 = vld [vmem:[#allocation10 + $0x170] sm:$0xff]
    %v437 = vld [vmem:[#allocation10 + $0x178] sm:$0xff]
    %v438 = vld [vmem:[#allocation10 + $0x180] sm:$0xff]
    %v439 = vld [vmem:[#allocation10 + $0x188] sm:$0xff]
    %v440 = vld [vmem:[#allocation10 + $0x190] sm:$0xff]
    %v441 = vld [vmem:[#allocation10 + $0x198] sm:$0xff]
    %v442 = vld [vmem:[#allocation10 + $0x1a0] sm:$0xff]
    %v443 = vld [vmem:[#allocation10 + $0x1a8] sm:$0xff]
    %v444 = vld [vmem:[#allocation10 + $0x1b0] sm:$0xff]
    %v445 = vld [vmem:[#allocation10 + $0x1b8] sm:$0xff]
    %v446 = vld [vmem:[#allocation10 + $0x1c0] sm:$0xff]
    %v447 = vld [vmem:[#allocation10 + $0x1c8] sm:$0xff]
    %v448 = vld [vmem:[#allocation10 + $0x1d0] sm:$0xff]
    %v449 = vld [vmem:[#allocation10 + $0x1d8] sm:$0xff]
    %v450 = vld [vmem:[#allocation10 + $0x1e0] sm:$0xff]
    %v451 = vld [vmem:[#allocation10 + $0x1e8] sm:$0xff]
    %v452 = vld [vmem:[#allocation10 + $0x1f0] sm:$0xff]
    %v453 = vld [vmem:[#allocation10 + $0x1f8] sm:$0xff]
    %v454 = vld [vmem:[#allocation2] sm:$0xff]
    %v455 = vld [vmem:[#allocation2 + $0x8] sm:$0xff]
    %v456 = vld [vmem:[#allocation2 + $0x10] sm:$0xff]
    %v457 = vld [vmem:[#allocation2 + $0x18] sm:$0xff]
    %v458 = vld [vmem:[#allocation3] sm:$0xff]
    %459 = vmatprep.subr.mxu0 %v391
    %460 = vmatpush1.msra.mxu0 %v390
    %461 = vmatprep.subr.mxu0 %v395
    %462 = vmatpush1.msra.mxu0 %v394
    %463 = vmatprep.subr.mxu0 %v399
    %464 = vmatpush1.msra.mxu0 %v398
    %465 = vmatprep.subr.mxu0 %v403
    %466 = vmatpush1.msra.mxu0 %v402
    %467 = vmatprep.subr.mxu0 %v407
    %468 = vmatpush1.msra.mxu0 %v406
    %469 = vmatprep.subr.mxu0 %v411
    %470 = vmatpush1.msra.mxu0 %v410
    %471 = vmatprep.subr.mxu0 %v415
    %472 = vmatpush1.msra.mxu0 %v414
    %473 = vmatprep.subr.mxu0 %v419
    %474 = vmatpush1.msra.mxu0 %v418
    %475 = vmatprep.subr.mxu0 %v423
    %476 = vmatpush1.msra.mxu0 %v422
    %477 = vmatprep.subr.mxu0 %v427
    %478 = vmatpush1.msra.mxu0 %v426
    %479 = vmatprep.subr.mxu0 %v431
    %480 = vmatpush1.msra.mxu0 %v430
    %481 = vmatprep.subr.mxu0 %v435
    %482 = vmatpush1.msra.mxu0 %v434
    %483 = vmatprep.subr.mxu0 %v439
    %484 = vmatpush1.msra.mxu0 %v438
    %485 = vmatprep.subr.mxu0 %v443
    %486 = vmatpush1.msra.mxu0 %v442
    %487 = vmatprep.subr.mxu0 %v447
    %488 = vmatpush1.msra.mxu0 %v446
    %489 = vmatprep.subr.mxu0 %v451
    %490 = vmatpush1.msra.mxu0 %v450
    %491 = vmatprep.subr.mxu0 0.0
    %492 = vmatpush1.msra.mxu0 0.0
    %493 = vmatprep.subr.mxu0 0.0
    %494 = vmatpush1.msra.mxu0 0.0
    %495 = vmatprep.subr.mxu0 0.0
    %496 = vmatpush1.msra.mxu0 0.0
    %497 = vmatprep.subr.mxu0 0.0
    %498 = vmatpush1.msra.mxu0 0.0
    %499 = vmatprep.subr.mxu0 0.0
    %500 = vmatpush1.msra.mxu0 0.0
    %501 = vmatprep.subr.mxu0 0.0
    %502 = vmatpush1.msra.mxu0 0.0
    %503 = vmatprep.subr.mxu0 0.0
    %504 = vmatpush1.msra.mxu0 0.0
    %505 = vmatprep.subr.mxu0 0.0
    %506 = vmatpush1.msra.mxu0 0.0
    %507 = vmatprep.subr.mxu0 0.0
    %508 = vmatpush1.msra.mxu0 0.0
    %509 = vmatprep.subr.mxu0 0.0
    %510 = vmatpush1.msra.mxu0 0.0
    %511 = vmatprep.subr.mxu0 0.0
    %512 = vmatpush1.msra.mxu0 0.0
    %513 = vmatprep.subr.mxu0 0.0
    %514 = vmatpush1.msra.mxu0 0.0
    %515 = vmatprep.subr.mxu0 0.0
    %516 = vmatpush1.msra.mxu0 0.0
    %517 = vmatprep.subr.mxu0 0.0
    %518 = vmatpush1.msra.mxu0 0.0
    %519 = vmatprep.subr.mxu0 0.0
    %520 = vmatpush1.msra.mxu0 0.0
    %521 = vmatprep.subr.mxu0 0.0
    %522 = vmatpush1.msra.mxu0 0.0
    %523 = vmatprep.mubr.f32.mxu0 0.0
    %524 = vmatmul.mubr.f32.gmra.mrb[0].mxu0 %v458
    %v525 = vpop.f32.mrb[0].mxu0
    %v526 = vadd.f32 0.0, %v525
    %v527 = vpop.f32.mrb[0].mxu0
    %v528 = vadd.f32 0.0, %v527
    %529 = vdwg.mxu0
    %530 = vmatprep.subr.mxu0 %v393
    %531 = vmatpush1.msra.mxu0 %v392
    %532 = vmatprep.subr.mxu0 %v397
    %533 = vmatpush1.msra.mxu0 %v396
    %534 = vmatprep.subr.mxu0 %v401
    %535 = vmatpush1.msra.mxu0 %v400
    %536 = vmatprep.subr.mxu0 %v405
    %537 = vmatpush1.msra.mxu0 %v404
    %538 = vmatprep.subr.mxu0 %v409
    %539 = vmatpush1.msra.mxu0 %v408
    %540 = vmatprep.subr.mxu0 %v413
    %541 = vmatpush1.msra.mxu0 %v412
    %542 = vmatprep.subr.mxu0 %v417
    %543 = vmatpush1.msra.mxu0 %v416
    %544 = vmatprep.subr.mxu0 %v421
    %545 = vmatpush1.msra.mxu0 %v420
    %546 = vmatprep.subr.mxu0 %v425
    %547 = vmatpush1.msra.mxu0 %v424
    %548 = vmatprep.subr.mxu0 %v429
    %549 = vmatpush1.msra.mxu0 %v428
    %550 = vmatprep.subr.mxu0 %v433
    %551 = vmatpush1.msra.mxu0 %v432
    %552 = vmatprep.subr.mxu0 %v437
    %553 = vmatpush1.msra.mxu0 %v436
    %554 = vmatprep.subr.mxu0 %v441
    %555 = vmatpush1.msra.mxu0 %v440
    %556 = vmatprep.subr.mxu0 %v445
    %557 = vmatpush1.msra.mxu0 %v444
    %558 = vmatprep.subr.mxu0 %v449
    %559 = vmatpush1.msra.mxu0 %v448
    %560 = vmatprep.subr.mxu0 %v453
    %561 = vmatpush1.msra.mxu0 %v452
    %562 = vmatprep.subr.mxu0 0.0
    %563 = vmatpush1.msra.mxu0 0.0
    %564 = vmatprep.subr.mxu0 0.0
    %565 = vmatpush1.msra.mxu0 0.0
    %566 = vmatprep.subr.mxu0 0.0
    %567 = vmatpush1.msra.mxu0 0.0
    %568 = vmatprep.subr.mxu0 0.0
    %569 = vmatpush1.msra.mxu0 0.0
    %570 = vmatprep.subr.mxu0 0.0
    %571 = vmatpush1.msra.mxu0 0.0
    %572 = vmatprep.subr.mxu0 0.0
    %573 = vmatpush1.msra.mxu0 0.0
    %574 = vmatprep.subr.mxu0 0.0
    %575 = vmatpush1.msra.mxu0 0.0
    %576 = vmatprep.subr.mxu0 0.0
    %577 = vmatpush1.msra.mxu0 0.0
    %578 = vmatprep.subr.mxu0 0.0
    %579 = vmatpush1.msra.mxu0 0.0
    %580 = vmatprep.subr.mxu0 0.0
    %581 = vmatpush1.msra.mxu0 0.0
    %582 = vmatprep.subr.mxu0 0.0
    %583 = vmatpush1.msra.mxu0 0.0
    %584 = vmatprep.subr.mxu0 0.0
    %585 = vmatpush1.msra.mxu0 0.0
    %586 = vmatprep.subr.mxu0 0.0
    %587 = vmatpush1.msra.mxu0 0.0
    %588 = vmatprep.subr.mxu0 0.0
    %589 = vmatpush1.msra.mxu0 0.0
    %590 = vmatprep.subr.mxu0 0.0
    %591 = vmatpush1.msra.mxu0 0.0
    %592 = vmatprep.subr.mxu0 0.0
    %593 = vmatpush1.msra.mxu0 0.0
    %594 = vmatprep.mubr.f32.mxu0 0.0
    %595 = vmatmul.mubr.f32.gmra.mrb[0].mxu0 %v458
    %v596 = vpop.f32.mrb[0].mxu0
    %v597 = vadd.f32 0.0, %v596
    %v598 = vpop.f32.mrb[0].mxu0
    %v599 = vadd.f32 0.0, %v598
    %600 = vdwg.mxu0
    %v601 = vadd.f32 %v454, %v526
    %v602 = vadd.f32 %v455, %v528
    %v603 = vadd.f32 %v456, %v597
    %v604 = vadd.f32 %v457, %v599
    %v605 = vxor.u32 %v601, 2147483648
    %v606 = vmul.f32 %v605, 1.442695
    %v607 = vpow.pop %v606
    %v608 = vadd.f32 %v607, 1.0
    %v609 = vrcp.pop %v608
    %v610 = vmul.f32 1.0, %v609
    %v611 = vxor.u32 %v602, 2147483648
    %v612 = vmul.f32 %v611, 1.442695
    %v613 = vpow.pop %v612
    %v614 = vadd.f32 %v613, 1.0
    %v615 = vrcp.pop %v614
    %v616 = vmul.f32 1.0, %v615
    %v617 = vxor.u32 %v603, 2147483648
    %v618 = vmul.f32 %v617, 1.442695
    %v619 = vpow.pop %v618
    %v620 = vadd.f32 %v619, 1.0
    %v621 = vrcp.pop %v620
    %v622 = vmul.f32 1.0, %v621
    %v623 = vtanh.pop %v604
    %v624 = vld [vmem:[#allocation4] sm:$0xff]
    %v625 = vmul.f32 %v624, %v616
    %v626 = vmul.f32 %v610, %v623
    %v627 = vadd.f32 %v625, %v626
    %v628 = vtanh.pop %v627
    %v629 = vmul.f32 %v622, %v628
    %630 = vst [vmem:[#allocation4] sm:$0xff] %v627
    %631 = vst [vmem:[#allocation3] sm:$0xff] %v629
    %632 = vst [vmem:[#allocation11] sm:$0xff] %v629
    %s633 = scalar_lea.vmem [#allocation2], 32
    %v634 = vld [vmem:[%s633] sm:$0xff]
    %v635 = vld [vmem:[%s633 + $0x8] sm:$0xff]
    %v636 = vld [vmem:[%s633 + $0x10] sm:$0xff]
    %v637 = vld [vmem:[%s633 + $0x18] sm:$0xff]
    %v638 = vld [vmem:[#allocation3] sm:$0xff]
    %639 = vmatprep.subr.mxu0 %v391
    %640 = vmatpush1.msra.mxu0 %v390
    %641 = vmatprep.subr.mxu0 %v395
    %642 = vmatpush1.msra.mxu0 %v394
    %643 = vmatprep.subr.mxu0 %v399
    %644 = vmatpush1.msra.mxu0 %v398
    %645 = vmatprep.subr.mxu0 %v403
    %646 = vmatpush1.msra.mxu0 %v402
    %647 = vmatprep.subr.mxu0 %v407
    %648 = vmatpush1.msra.mxu0 %v406
    %649 = vmatprep.subr.mxu0 %v411
    %650 = vmatpush1.msra.mxu0 %v410
    %651 = vmatprep.subr.mxu0 %v415
    %652 = vmatpush1.msra.mxu0 %v414
    %653 = vmatprep.subr.mxu0 %v419
    %654 = vmatpush1.msra.mxu0 %v418
    %655 = vmatprep.subr.mxu0 %v423
    %656 = vmatpush1.msra.mxu0 %v422
    %657 = vmatprep.subr.mxu0 %v427
    %658 = vmatpush1.msra.mxu0 %v426
    %659 = vmatprep.subr.mxu0 %v431
    %660 = vmatpush1.msra.mxu0 %v430
    %661 = vmatprep.subr.mxu0 %v435
    %662 = vmatpush1.msra.mxu0 %v434
    %663 = vmatprep.subr.mxu0 %v439
    %664 = vmatpush1.msra.mxu0 %v438
    %665 = vmatprep.subr.mxu0 %v443
    %666 = vmatpush1.msra.mxu0 %v442
    %667 = vmatprep.subr.mxu0 %v447
    %668 = vmatpush1.msra.mxu0 %v446
    %669 = vmatprep.subr.mxu0 %v451
    %670 = vmatpush1.msra.mxu0 %v450
    %671 = vmatprep.subr.mxu0 0.0
    %672 = vmatpush1.msra.mxu0 0.0
    %673 = vmatprep.subr.mxu0 0.0
    %674 = vmatpush1.msra.mxu0 0.0
    %675 = vmatprep.subr.mxu0 0.0
    %676 = vmatpush1.msra.mxu0 0.0
    %677 = vmatprep.subr.mxu0 0.0
    %678 = vmatpush1.msra.mxu0 0.0
    %679 = vmatprep.subr.mxu0 0.0
    %680 = vmatpush1.msra.mxu0 0.0
    %681 = vmatprep.subr.mxu0 0.0
    %682 = vmatpush1.msra.mxu0 0.0
    %683 = vmatprep.subr.mxu0 0.0
    %684 = vmatpush1.msra.mxu0 0.0
    %685 = vmatprep.subr.mxu0 0.0
    %686 = vmatpush1.msra.mxu0 0.0
    %687 = vmatprep.subr.mxu0 0.0
    %688 = vmatpush1.msra.mxu0 0.0
    %689 = vmatprep.subr.mxu0 0.0
    %690 = vmatpush1.msra.mxu0 0.0
    %691 = vmatprep.subr.mxu0 0.0
    %692 = vmatpush1.msra.mxu0 0.0
    %693 = vmatprep.subr.mxu0 0.0
    %694 = vmatpush1.msra.mxu0 0.0
    %695 = vmatprep.subr.mxu0 0.0
    %696 = vmatpush1.msra.mxu0 0.0
    %697 = vmatprep.subr.mxu0 0.0
    %698 = vmatpush1.msra.mxu0 0.0
    %699 = vmatprep.subr.mxu0 0.0
    %700 = vmatpush1.msra.mxu0 0.0
    %701 = vmatprep.subr.mxu0 0.0
    %702 = vmatpush1.msra.mxu0 0.0
    %703 = vmatprep.mubr.f32.mxu0 0.0
    %704 = vmatmul.mubr.f32.gmra.mrb[0].mxu0 %v638
    %v705 = vpop.f32.mrb[0].mxu0
    %v706 = vadd.f32 0.0, %v705
    %v707 = vpop.f32.mrb[0].mxu0
    %v708 = vadd.f32 0.0, %v707
    %709 = vdwg.mxu0
    %710 = vmatprep.subr.mxu0 %v393
    %711 = vmatpush1.msra.mxu0 %v392
    %712 = vmatprep.subr.mxu0 %v397
    %713 = vmatpush1.msra.mxu0 %v396
    %714 = vmatprep.subr.mxu0 %v401
    %715 = vmatpush1.msra.mxu0 %v400
    %716 = vmatprep.subr.mxu0 %v405
    %717 = vmatpush1.msra.mxu0 %v404
    %718 = vmatprep.subr.mxu0 %v409
    %719 = vmatpush1.msra.mxu0 %v408
    %720 = vmatprep.subr.mxu0 %v413
    %721 = vmatpush1.msra.mxu0 %v412
    %722 = vmatprep.subr.mxu0 %v417
    %723 = vmatpush1.msra.mxu0 %v416
    %724 = vmatprep.subr.mxu0 %v421
    %725 = vmatpush1.msra.mxu0 %v420
    %726 = vmatprep.subr.mxu0 %v425
    %727 = vmatpush1.msra.mxu0 %v424
    %728 = vmatprep.subr.mxu0 %v429
    %729 = vmatpush1.msra.mxu0 %v428
    %730 = vmatprep.subr.mxu0 %v433
    %731 = vmatpush1.msra.mxu0 %v432
    %732 = vmatprep.subr.mxu0 %v437
    %733 = vmatpush1.msra.mxu0 %v436
    %734 = vmatprep.subr.mxu0 %v441
    %735 = vmatpush1.msra.mxu0 %v440
    %736 = vmatprep.subr.mxu0 %v445
    %737 = vmatpush1.msra.mxu0 %v444
    %738 = vmatprep.subr.mxu0 %v449
    %739 = vmatpush1.msra.mxu0 %v448
    %740 = vmatprep.subr.mxu0 %v453
    %741 = vmatpush1.msra.mxu0 %v452
    %742 = vmatprep.subr.mxu0 0.0
    %743 = vmatpush1.msra.mxu0 0.0
    %744 = vmatprep.subr.mxu0 0.0
    %745 = vmatpush1.msra.mxu0 0.0
    %746 = vmatprep.subr.mxu0 0.0
    %747 = vmatpush1.msra.mxu0 0.0
    %748 = vmatprep.subr.mxu0 0.0
    %749 = vmatpush1.msra.mxu0 0.0
    %750 = vmatprep.subr.mxu0 0.0
    %751 = vmatpush1.msra.mxu0 0.0
    %752 = vmatprep.subr.mxu0 0.0
    %753 = vmatpush1.msra.mxu0 0.0
    %754 = vmatprep.subr.mxu0 0.0
    %755 = vmatpush1.msra.mxu0 0.0
    %756 = vmatprep.subr.mxu0 0.0
    %757 = vmatpush1.msra.mxu0 0.0
    %758 = vmatprep.subr.mxu0 0.0
    %759 = vmatpush1.msra.mxu0 0.0
    %760 = vmatprep.subr.mxu0 0.0
    %761 = vmatpush1.msra.mxu0 0.0
    %762 = vmatprep.subr.mxu0 0.0
    %763 = vmatpush1.msra.mxu0 0.0
    %764 = vmatprep.subr.mxu0 0.0
    %765 = vmatpush1.msra.mxu0 0.0
    %766 = vmatprep.subr.mxu0 0.0
    %767 = vmatpush1.msra.mxu0 0.0
    %768 = vmatprep.subr.mxu0 0.0
    %769 = vmatpush1.msra.mxu0 0.0
    %770 = vmatprep.subr.mxu0 0.0
    %771 = vmatpush1.msra.mxu0 0.0
    %772 = vmatprep.subr.mxu0 0.0
    %773 = vmatpush1.msra.mxu0 0.0
    %774 = vmatprep.mubr.f32.mxu0 0.0
    %775 = vmatmul.mubr.f32.gmra.mrb[0].mxu0 %v638
    %v776 = vpop.f32.mrb[0].mxu0
    %v777 = vadd.f32 0.0, %v776
    %v778 = vpop.f32.mrb[0].mxu0
    %v779 = vadd.f32 0.0, %v778
    %780 = vdwg.mxu0
    %v781 = vadd.f32 %v634, %v706
    %v782 = vadd.f32 %v635, %v708
    %v783 = vadd.f32 %v636, %v777
    %v784 = vadd.f32 %v637, %v779
    %v785 = vxor.u32 %v781, 2147483648
    %v786 = vmul.f32 %v785, 1.442695
    %v787 = vpow.pop %v786
    %v788 = vadd.f32 %v787, 1.0
    %v789 = vrcp.pop %v788
    %v790 = vmul.f32 1.0, %v789
    %v791 = vxor.u32 %v782, 2147483648
    %v792 = vmul.f32 %v791, 1.442695
    %v793 = vpow.pop %v792
    %v794 = vadd.f32 %v793, 1.0
    %v795 = vrcp.pop %v794
    %v796 = vmul.f32 1.0, %v795
    %v797 = vxor.u32 %v783, 2147483648
    %v798 = vmul.f32 %v797, 1.442695
    %v799 = vpow.pop %v798
    %v800 = vadd.f32 %v799, 1.0
    %v801 = vrcp.pop %v800
    %v802 = vmul.f32 1.0, %v801
    %v803 = vtanh.pop %v784
    %v804 = vld [vmem:[#allocation4] sm:$0xff]
    %v805 = vmul.f32 %v804, %v796
    %v806 = vmul.f32 %v790, %v803
    %v807 = vadd.f32 %v805, %v806
    %v808 = vtanh.pop %v807
    %v809 = vmul.f32 %v802, %v808
    %810 = vst [vmem:[#allocation4] sm:$0xff] %v807
    %811 = vst [vmem:[#allocation3] sm:$0xff] %v809
    %s812 = scalar_lea.vmem [#allocation11], 8
    %813 = vst [vmem:[%s812] sm:$0xff] %v809
    %s814 = scalar_lea.vmem [#allocation2], 64
    %v815 = vld [vmem:[%s814] sm:$0xff]
    %v816 = vld [vmem:[%s814 + $0x8] sm:$0xff]
    %v817 = vld [vmem:[%s814 + $0x10] sm:$0xff]
    %v818 = vld [vmem:[%s814 + $0x18] sm:$0xff]
    %v819 = vld [vmem:[#allocation3] sm:$0xff]
    %820 = vmatprep.subr.mxu0 %v391
    %821 = vmatpush1.msra.mxu0 %v390
    %822 = vmatprep.subr.mxu0 %v395
    %823 = vmatpush1.msra.mxu0 %v394
    %824 = vmatprep.subr.mxu0 %v399
    %825 = vmatpush1.msra.mxu0 %v398
    %826 = vmatprep.subr.mxu0 %v403
    %827 = vmatpush1.msra.mxu0 %v402
    %828 = vmatprep.subr.mxu0 %v407
    %829 = vmatpush1.msra.mxu0 %v406
    %830 = vmatprep.subr.mxu0 %v411
    %831 = vmatpush1.msra.mxu0 %v410
    %832 = vmatprep.subr.mxu0 %v415
    %833 = vmatpush1.msra.mxu0 %v414
    %834 = vmatprep.subr.mxu0 %v419
    %835 = vmatpush1.msra.mxu0 %v418
    %836 = vmatprep.subr.mxu0 %v423
    %837 = vmatpush1.msra.mxu0 %v422
    %838 = vmatprep.subr.mxu0 %v427
    %839 = vmatpush1.msra.mxu0 %v426
    %840 = vmatprep.subr.mxu0 %v431
    %841 = vmatpush1.msra.mxu0 %v430
    %842 = vmatprep.subr.mxu0 %v435
    %843 = vmatpush1.msra.mxu0 %v434
    %844 = vmatprep.subr.mxu0 %v439
    %845 = vmatpush1.msra.mxu0 %v438
    %846 = vmatprep.subr.mxu0 %v443
    %847 = vmatpush1.msra.mxu0 %v442
    %848 = vmatprep.subr.mxu0 %v447
    %849 = vmatpush1.msra.mxu0 %v446
    %850 = vmatprep.subr.mxu0 %v451
    %851 = vmatpush1.msra.mxu0 %v450
    %852 = vmatprep.subr.mxu0 0.0
    %853 = vmatpush1.msra.mxu0 0.0
    %854 = vmatprep.subr.mxu0 0.0
    %855 = vmatpush1.msra.mxu0 0.0
    %856 = vmatprep.subr.mxu0 0.0
    %857 = vmatpush1.msra.mxu0 0.0
    %858 = vmatprep.subr.mxu0 0.0
    %859 = vmatpush1.msra.mxu0 0.0
    %860 = vmatprep.subr.mxu0 0.0
    %861 = vmatpush1.msra.mxu0 0.0
    %862 = vmatprep.subr.mxu0 0.0
    %863 = vmatpush1.msra.mxu0 0.0
    %864 = vmatprep.subr.mxu0 0.0
    %865 = vmatpush1.msra.mxu0 0.0
    %866 = vmatprep.subr.mxu0 0.0
    %867 = vmatpush1.msra.mxu0 0.0
    %868 = vmatprep.subr.mxu0 0.0
    %869 = vmatpush1.msra.mxu0 0.0
    %870 = vmatprep.subr.mxu0 0.0
    %871 = vmatpush1.msra.mxu0 0.0
    %872 = vmatprep.subr.mxu0 0.0
    %873 = vmatpush1.msra.mxu0 0.0
    %874 = vmatprep.subr.mxu0 0.0
    %875 = vmatpush1.msra.mxu0 0.0
    %876 = vmatprep.subr.mxu0 0.0
    %877 = vmatpush1.msra.mxu0 0.0
    %878 = vmatprep.subr.mxu0 0.0
    %879 = vmatpush1.msra.mxu0 0.0
    %880 = vmatprep.subr.mxu0 0.0
    %881 = vmatpush1.msra.mxu0 0.0
    %882 = vmatprep.subr.mxu0 0.0
    %883 = vmatpush1.msra.mxu0 0.0
    %884 = vmatprep.mubr.f32.mxu0 0.0
    %885 = vmatmul.mubr.f32.gmra.mrb[0].mxu0 %v819
    %v886 = vpop.f32.mrb[0].mxu0
    %v887 = vadd.f32 0.0, %v886
    %v888 = vpop.f32.mrb[0].mxu0
    %v889 = vadd.f32 0.0, %v888
    %890 = vdwg.mxu0
    %891 = vmatprep.subr.mxu0 %v393
    %892 = vmatpush1.msra.mxu0 %v392
    %893 = vmatprep.subr.mxu0 %v397
    %894 = vmatpush1.msra.mxu0 %v396
    %895 = vmatprep.subr.mxu0 %v401
    %896 = vmatpush1.msra.mxu0 %v400
    %897 = vmatprep.subr.mxu0 %v405
    %898 = vmatpush1.msra.mxu0 %v404
    %899 = vmatprep.subr.mxu0 %v409
    %900 = vmatpush1.msra.mxu0 %v408
    %901 = vmatprep.subr.mxu0 %v413
    %902 = vmatpush1.msra.mxu0 %v412
    %903 = vmatprep.subr.mxu0 %v417
    %904 = vmatpush1.msra.mxu0 %v416
    %905 = vmatprep.subr.mxu0 %v421
    %906 = vmatpush1.msra.mxu0 %v420
    %907 = vmatprep.subr.mxu0 %v425
    %908 = vmatpush1.msra.mxu0 %v424
    %909 = vmatprep.subr.mxu0 %v429
    %910 = vmatpush1.msra.mxu0 %v428
    %911 = vmatprep.subr.mxu0 %v433
    %912 = vmatpush1.msra.mxu0 %v432
    %913 = vmatprep.subr.mxu0 %v437
    %914 = vmatpush1.msra.mxu0 %v436
    %915 = vmatprep.subr.mxu0 %v441
    %916 = vmatpush1.msra.mxu0 %v440
    %917 = vmatprep.subr.mxu0 %v445
    %918 = vmatpush1.msra.mxu0 %v444
    %919 = vmatprep.subr.mxu0 %v449
    %920 = vmatpush1.msra.mxu0 %v448
    %921 = vmatprep.subr.mxu0 %v453
    %922 = vmatpush1.msra.mxu0 %v452
    %923 = vmatprep.subr.mxu0 0.0
    %924 = vmatpush1.msra.mxu0 0.0
    %925 = vmatprep.subr.mxu0 0.0
    %926 = vmatpush1.msra.mxu0 0.0
    %927 = vmatprep.subr.mxu0 0.0
    %928 = vmatpush1.msra.mxu0 0.0
    %929 = vmatprep.subr.mxu0 0.0
    %930 = vmatpush1.msra.mxu0 0.0
    %931 = vmatprep.subr.mxu0 0.0
    %932 = vmatpush1.msra.mxu0 0.0
    %933 = vmatprep.subr.mxu0 0.0
    %934 = vmatpush1.msra.mxu0 0.0
    %935 = vmatprep.subr.mxu0 0.0
    %936 = vmatpush1.msra.mxu0 0.0
    %937 = vmatprep.subr.mxu0 0.0
    %938 = vmatpush1.msra.mxu0 0.0
    %939 = vmatprep.subr.mxu0 0.0
    %940 = vmatpush1.msra.mxu0 0.0
    %941 = vmatprep.subr.mxu0 0.0
    %942 = vmatpush1.msra.mxu0 0.0
    %943 = vmatprep.subr.mxu0 0.0
    %944 = vmatpush1.msra.mxu0 0.0
    %945 = vmatprep.subr.mxu0 0.0
    %946 = vmatpush1.msra.mxu0 0.0
    %947 = vmatprep.subr.mxu0 0.0
    %948 = vmatpush1.msra.mxu0 0.0
    %949 = vmatprep.subr.mxu0 0.0
    %950 = vmatpush1.msra.mxu0 0.0
    %951 = vmatprep.subr.mxu0 0.0
    %952 = vmatpush1.msra.mxu0 0.0
    %953 = vmatprep.subr.mxu0 0.0
    %954 = vmatpush1.msra.mxu0 0.0
    %955 = vmatprep.mubr.f32.mxu0 0.0
    %956 = vmatmul.mubr.f32.gmra.mrb[0].mxu0 %v819
    %v957 = vpop.f32.mrb[0].mxu0
    %v958 = vadd.f32 0.0, %v957
    %v959 = vpop.f32.mrb[0].mxu0
    %v960 = vadd.f32 0.0, %v959
    %961 = vdwg.mxu0
    %v962 = vadd.f32 %v815, %v887
    %v963 = vadd.f32 %v816, %v889
    %v964 = vadd.f32 %v817, %v958
    %v965 = vadd.f32 %v818, %v960
    %v966 = vxor.u32 %v962, 2147483648
    %v967 = vmul.f32 %v966, 1.442695
    %v968 = vpow.pop %v967
    %v969 = vadd.f32 %v968, 1.0
    %v970 = vrcp.pop %v969
    %v971 = vmul.f32 1.0, %v970
    %v972 = vxor.u32 %v963, 2147483648
    %v973 = vmul.f32 %v972, 1.442695
    %v974 = vpow.pop %v973
    %v975 = vadd.f32 %v974, 1.0
    %v976 = vrcp.pop %v975
    %v977 = vmul.f32 1.0, %v976
    %v978 = vxor.u32 %v964, 2147483648
    %v979 = vmul.f32 %v978, 1.442695
    %v980 = vpow.pop %v979
    %v981 = vadd.f32 %v980, 1.0
    %v982 = vrcp.pop %v981
    %v983 = vmul.f32 1.0, %v982
    %v984 = vtanh.pop %v965
    %v985 = vld [vmem:[#allocation4] sm:$0xff]
    %v986 = vmul.f32 %v985, %v977
    %v987 = vmul.f32 %v971, %v984
    %v988 = vadd.f32 %v986, %v987
    %v989 = vtanh.pop %v988
    %v990 = vmul.f32 %v983, %v989
    %991 = vst [vmem:[#allocation4] sm:$0xff] %v988
    %992 = vst [vmem:[#allocation3] sm:$0xff] %v990
    %s993 = scalar_lea.vmem [#allocation11], 16
    %994 = vst [vmem:[%s993] sm:$0xff] %v990
    %s995 = scalar_lea.vmem [#allocation2], 96
    %v996 = vld [vmem:[%s995] sm:$0xff]
    %v997 = vld [vmem:[%s995 + $0x8] sm:$0xff]
    %v998 = vld [vmem:[%s995 + $0x10] sm:$0xff]
    %v999 = vld [vmem:[%s995 + $0x18] sm:$0xff]
    %v1000 = vld [vmem:[#allocation3] sm:$0xff]
    %1001 = vmatprep.subr.mxu0 %v391
    %1002 = vmatpush1.msra.mxu0 %v390
    %1003 = vmatprep.subr.mxu0 %v395
    %1004 = vmatpush1.msra.mxu0 %v394
    %1005 = vmatprep.subr.mxu0 %v399
    %1006 = vmatpush1.msra.mxu0 %v398
    %1007 = vmatprep.subr.mxu0 %v403
    %1008 = vmatpush1.msra.mxu0 %v402
    %1009 = vmatprep.subr.mxu0 %v407
    %1010 = vmatpush1.msra.mxu0 %v406
    %1011 = vmatprep.subr.mxu0 %v411
    %1012 = vmatpush1.msra.mxu0 %v410
    %1013 = vmatprep.subr.mxu0 %v415
    %1014 = vmatpush1.msra.mxu0 %v414
    %1015 = vmatprep.subr.mxu0 %v419
    %1016 = vmatpush1.msra.mxu0 %v418
    %1017 = vmatprep.subr.mxu0 %v423
    %1018 = vmatpush1.msra.mxu0 %v422
    %1019 = vmatprep.subr.mxu0 %v427
    %1020 = vmatpush1.msra.mxu0 %v426
    %1021 = vmatprep.subr.mxu0 %v431
    %1022 = vmatpush1.msra.mxu0 %v430
    %1023 = vmatprep.subr.mxu0 %v435
    %1024 = vmatpush1.msra.mxu0 %v434
    %1025 = vmatprep.subr.mxu0 %v439
    %1026 = vmatpush1.msra.mxu0 %v438
    %1027 = vmatprep.subr.mxu0 %v443
    %1028 = vmatpush1.msra.mxu0 %v442
    %1029 = vmatprep.subr.mxu0 %v447
    %1030 = vmatpush1.msra.mxu0 %v446
    %1031 = vmatprep.subr.mxu0 %v451
    %1032 = vmatpush1.msra.mxu0 %v450
    %1033 = vmatprep.subr.mxu0 0.0
    %1034 = vmatpush1.msra.mxu0 0.0
    %1035 = vmatprep.subr.mxu0 0.0
    %1036 = vmatpush1.msra.mxu0 0.0
    %1037 = vmatprep.subr.mxu0 0.0
    %1038 = vmatpush1.msra.mxu0 0.0
    %1039 = vmatprep.subr.mxu0 0.0
    %1040 = vmatpush1.msra.mxu0 0.0
    %1041 = vmatprep.subr.mxu0 0.0
    %1042 = vmatpush1.msra.mxu0 0.0
    %1043 = vmatprep.subr.mxu0 0.0
    %1044 = vmatpush1.msra.mxu0 0.0
    %1045 = vmatprep.subr.mxu0 0.0
    %1046 = vmatpush1.msra.mxu0 0.0
    %1047 = vmatprep.subr.mxu0 0.0
    %1048 = vmatpush1.msra.mxu0 0.0
    %1049 = vmatprep.subr.mxu0 0.0
    %1050 = vmatpush1.msra.mxu0 0.0
    %1051 = vmatprep.subr.mxu0 0.0
    %1052 = vmatpush1.msra.mxu0 0.0
    %1053 = vmatprep.subr.mxu0 0.0
    %1054 = vmatpush1.msra.mxu0 0.0
    %1055 = vmatprep.subr.mxu0 0.0
    %1056 = vmatpush1.msra.mxu0 0.0
    %1057 = vmatprep.subr.mxu0 0.0
    %1058 = vmatpush1.msra.mxu0 0.0
    %1059 = vmatprep.subr.mxu0 0.0
    %1060 = vmatpush1.msra.mxu0 0.0
    %1061 = vmatprep.subr.mxu0 0.0
    %1062 = vmatpush1.msra.mxu0 0.0
    %1063 = vmatprep.subr.mxu0 0.0
    %1064 = vmatpush1.msra.mxu0 0.0
    %1065 = vmatprep.mubr.f32.mxu0 0.0
    %1066 = vmatmul.mubr.f32.gmra.mrb[0].mxu0 %v1000
    %v1067 = vpop.f32.mrb[0].mxu0
    %v1068 = vadd.f32 0.0, %v1067
    %v1069 = vpop.f32.mrb[0].mxu0
    %v1070 = vadd.f32 0.0, %v1069
    %1071 = vdwg.mxu0
    %1072 = vmatprep.subr.mxu0 %v393
    %1073 = vmatpush1.msra.mxu0 %v392
    %1074 = vmatprep.subr.mxu0 %v397
    %1075 = vmatpush1.msra.mxu0 %v396
    %1076 = vmatprep.subr.mxu0 %v401
    %1077 = vmatpush1.msra.mxu0 %v400
    %1078 = vmatprep.subr.mxu0 %v405
    %1079 = vmatpush1.msra.mxu0 %v404
    %1080 = vmatprep.subr.mxu0 %v409
    %1081 = vmatpush1.msra.mxu0 %v408
    %1082 = vmatprep.subr.mxu0 %v413
    %1083 = vmatpush1.msra.mxu0 %v412
    %1084 = vmatprep.subr.mxu0 %v417
    %1085 = vmatpush1.msra.mxu0 %v416
    %1086 = vmatprep.subr.mxu0 %v421
    %1087 = vmatpush1.msra.mxu0 %v420
    %1088 = vmatprep.subr.mxu0 %v425
    %1089 = vmatpush1.msra.mxu0 %v424
    %1090 = vmatprep.subr.mxu0 %v429
    %1091 = vmatpush1.msra.mxu0 %v428
    %1092 = vmatprep.subr.mxu0 %v433
    %1093 = vmatpush1.msra.mxu0 %v432
    %1094 = vmatprep.subr.mxu0 %v437
    %1095 = vmatpush1.msra.mxu0 %v436
    %1096 = vmatprep.subr.mxu0 %v441
    %1097 = vmatpush1.msra.mxu0 %v440
    %1098 = vmatprep.subr.mxu0 %v445
    %1099 = vmatpush1.msra.mxu0 %v444
    %1100 = vmatprep.subr.mxu0 %v449
    %1101 = vmatpush1.msra.mxu0 %v448
    %1102 = vmatprep.subr.mxu0 %v453
    %1103 = vmatpush1.msra.mxu0 %v452
    %1104 = vmatprep.subr.mxu0 0.0
    %1105 = vmatpush1.msra.mxu0 0.0
    %1106 = vmatprep.subr.mxu0 0.0
    %1107 = vmatpush1.msra.mxu0 0.0
    %1108 = vmatprep.subr.mxu0 0.0
    %1109 = vmatpush1.msra.mxu0 0.0
    %1110 = vmatprep.subr.mxu0 0.0
    %1111 = vmatpush1.msra.mxu0 0.0
    %1112 = vmatprep.subr.mxu0 0.0
    %1113 = vmatpush1.msra.mxu0 0.0
    %1114 = vmatprep.subr.mxu0 0.0
    %1115 = vmatpush1.msra.mxu0 0.0
    %1116 = vmatprep.subr.mxu0 0.0
    %1117 = vmatpush1.msra.mxu0 0.0
    %1118 = vmatprep.subr.mxu0 0.0
    %1119 = vmatpush1.msra.mxu0 0.0
    %1120 = vmatprep.subr.mxu0 0.0
    %1121 = vmatpush1.msra.mxu0 0.0
    %1122 = vmatprep.subr.mxu0 0.0
    %1123 = vmatpush1.msra.mxu0 0.0
    %1124 = vmatprep.subr.mxu0 0.0
    %1125 = vmatpush1.msra.mxu0 0.0
    %1126 = vmatprep.subr.mxu0 0.0
    %1127 = vmatpush1.msra.mxu0 0.0
    %1128 = vmatprep.subr.mxu0 0.0
    %1129 = vmatpush1.msra.mxu0 0.0
    %1130 = vmatprep.subr.mxu0 0.0
    %1131 = vmatpush1.msra.mxu0 0.0
    %1132 = vmatprep.subr.mxu0 0.0
    %1133 = vmatpush1.msra.mxu0 0.0
    %1134 = vmatprep.subr.mxu0 0.0
    %1135 = vmatpush1.msra.mxu0 0.0
    %1136 = vmatprep.mubr.f32.mxu0 0.0
    %1137 = vmatmul.mubr.f32.gmra.mrb[0].mxu0 %v1000
    %v1138 = vpop.f32.mrb[0].mxu0
    %v1139 = vadd.f32 0.0, %v1138
    %v1140 = vpop.f32.mrb[0].mxu0
    %v1141 = vadd.f32 0.0, %v1140
    %1142 = vdwg.mxu0
    %v1143 = vadd.f32 %v996, %v1068
    %v1144 = vadd.f32 %v997, %v1070
    %v1145 = vadd.f32 %v998, %v1139
    %v1146 = vadd.f32 %v999, %v1141
    %v1147 = vxor.u32 %v1143, 2147483648
    %v1148 = vmul.f32 %v1147, 1.442695
    %v1149 = vpow.pop %v1148
    %v1150 = vadd.f32 %v1149, 1.0
    %v1151 = vrcp.pop %v1150
    %v1152 = vmul.f32 1.0, %v1151
    %v1153 = vxor.u32 %v1144, 2147483648
    %v1154 = vmul.f32 %v1153, 1.442695
    %v1155 = vpow.pop %v1154
    %v1156 = vadd.f32 %v1155, 1.0
    %v1157 = vrcp.pop %v1156
    %v1158 = vmul.f32 1.0, %v1157
    %v1159 = vxor.u32 %v1145, 2147483648
    %v1160 = vmul.f32 %v1159, 1.442695
    %v1161 = vpow.pop %v1160
    %v1162 = vadd.f32 %v1161, 1.0
    %v1163 = vrcp.pop %v1162
    %v1164 = vmul.f32 1.0, %v1163
    %v1165 = vtanh.pop %v1146
    %v1166 = vld [vmem:[#allocation4] sm:$0xff]
    %v1167 = vmul.f32 %v1166, %v1158
    %v1168 = vmul.f32 %v1152, %v1165
    %v1169 = vadd.f32 %v1167, %v1168
    %v1170 = vtanh.pop %v1169
    %v1171 = vmul.f32 %v1164, %v1170
    %1172 = vst [vmem:[#allocation4] sm:$0xff] %v1169
    %1173 = vst [vmem:[#allocation3] sm:$0xff] %v1171
    %s1174 = scalar_lea.vmem [#allocation11], 24
    %1175 = vst [vmem:[%s1174] sm:$0xff] %v1171
    %s1176 = scalar_lea.vmem [#allocation2], 128
    %v1177 = vld [vmem:[%s1176] sm:$0xff]
    %v1178 = vld [vmem:[%s1176 + $0x8] sm:$0xff]
    %v1179 = vld [vmem:[%s1176 + $0x10] sm:$0xff]
    %v1180 = vld [vmem:[%s1176 + $0x18] sm:$0xff]
    %v1181 = vld [vmem:[#allocation3] sm:$0xff]
    %1182 = vmatprep.subr.mxu0 %v391
    %1183 = vmatpush1.msra.mxu0 %v390
    %1184 = vmatprep.subr.mxu0 %v395
    %1185 = vmatpush1.msra.mxu0 %v394
    %1186 = vmatprep.subr.mxu0 %v399
    %1187 = vmatpush1.msra.mxu0 %v398
    %1188 = vmatprep.subr.mxu0 %v403
    %1189 = vmatpush1.msra.mxu0 %v402
    %1190 = vmatprep.subr.mxu0 %v407
    %1191 = vmatpush1.msra.mxu0 %v406
    %1192 = vmatprep.subr.mxu0 %v411
    %1193 = vmatpush1.msra.mxu0 %v410
    %1194 = vmatprep.subr.mxu0 %v415
    %1195 = vmatpush1.msra.mxu0 %v414
    %1196 = vmatprep.subr.mxu0 %v419
    %1197 = vmatpush1.msra.mxu0 %v418
    %1198 = vmatprep.subr.mxu0 %v423
    %1199 = vmatpush1.msra.mxu0 %v422
    %1200 = vmatprep.subr.mxu0 %v427
    %1201 = vmatpush1.msra.mxu0 %v426
    %1202 = vmatprep.subr.mxu0 %v431
    %1203 = vmatpush1.msra.mxu0 %v430
    %1204 = vmatprep.subr.mxu0 %v435
    %1205 = vmatpush1.msra.mxu0 %v434
    %1206 = vmatprep.subr.mxu0 %v439
    %1207 = vmatpush1.msra.mxu0 %v438
    %1208 = vmatprep.subr.mxu0 %v443
    %1209 = vmatpush1.msra.mxu0 %v442
    %1210 = vmatprep.subr.mxu0 %v447
    %1211 = vmatpush1.msra.mxu0 %v446
    %1212 = vmatprep.subr.mxu0 %v451
    %1213 = vmatpush1.msra.mxu0 %v450
    %1214 = vmatprep.subr.mxu0 0.0
    %1215 = vmatpush1.msra.mxu0 0.0
    %1216 = vmatprep.subr.mxu0 0.0
    %1217 = vmatpush1.msra.mxu0 0.0
    %1218 = vmatprep.subr.mxu0 0.0
    %1219 = vmatpush1.msra.mxu0 0.0
    %1220 = vmatprep.subr.mxu0 0.0
    %1221 = vmatpush1.msra.mxu0 0.0
    %1222 = vmatprep.subr.mxu0 0.0
    %1223 = vmatpush1.msra.mxu0 0.0
    %1224 = vmatprep.subr.mxu0 0.0
    %1225 = vmatpush1.msra.mxu0 0.0
    %1226 = vmatprep.subr.mxu0 0.0
    %1227 = vmatpush1.msra.mxu0 0.0
    %1228 = vmatprep.subr.mxu0 0.0
    %1229 = vmatpush1.msra.mxu0 0.0
    %1230 = vmatprep.subr.mxu0 0.0
    %1231 = vmatpush1.msra.mxu0 0.0
    %1232 = vmatprep.subr.mxu0 0.0
    %1233 = vmatpush1.msra.mxu0 0.0
    %1234 = vmatprep.subr.mxu0 0.0
    %1235 = vmatpush1.msra.mxu0 0.0
    %1236 = vmatprep.subr.mxu0 0.0
    %1237 = vmatpush1.msra.mxu0 0.0
    %1238 = vmatprep.subr.mxu0 0.0
    %1239 = vmatpush1.msra.mxu0 0.0
    %1240 = vmatprep.subr.mxu0 0.0
    %1241 = vmatpush1.msra.mxu0 0.0
    %1242 = vmatprep.subr.mxu0 0.0
    %1243 = vmatpush1.msra.mxu0 0.0
    %1244 = vmatprep.subr.mxu0 0.0
    %1245 = vmatpush1.msra.mxu0 0.0
    %1246 = vmatprep.mubr.f32.mxu0 0.0
    %1247 = vmatmul.mubr.f32.gmra.mrb[0].mxu0 %v1181
    %v1248 = vpop.f32.mrb[0].mxu0
    %v1249 = vadd.f32 0.0, %v1248
    %v1250 = vpop.f32.mrb[0].mxu0
    %v1251 = vadd.f32 0.0, %v1250
    %1252 = vdwg.mxu0
    %1253 = vmatprep.subr.mxu0 %v393
    %1254 = vmatpush1.msra.mxu0 %v392
    %1255 = vmatprep.subr.mxu0 %v397
    %1256 = vmatpush1.msra.mxu0 %v396
    %1257 = vmatprep.subr.mxu0 %v401
    %1258 = vmatpush1.msra.mxu0 %v400
    %1259 = vmatprep.subr.mxu0 %v405
    %1260 = vmatpush1.msra.mxu0 %v404
    %1261 = vmatprep.subr.mxu0 %v409
    %1262 = vmatpush1.msra.mxu0 %v408
    %1263 = vmatprep.subr.mxu0 %v413
    %1264 = vmatpush1.msra.mxu0 %v412
    %1265 = vmatprep.subr.mxu0 %v417
    %1266 = vmatpush1.msra.mxu0 %v416
    %1267 = vmatprep.subr.mxu0 %v421
    %1268 = vmatpush1.msra.mxu0 %v420
    %1269 = vmatprep.subr.mxu0 %v425
    %1270 = vmatpush1.msra.mxu0 %v424
    %1271 = vmatprep.subr.mxu0 %v429
    %1272 = vmatpush1.msra.mxu0 %v428
    %1273 = vmatprep.subr.mxu0 %v433
    %1274 = vmatpush1.msra.mxu0 %v432
    %1275 = vmatprep.subr.mxu0 %v437
    %1276 = vmatpush1.msra.mxu0 %v436
    %1277 = vmatprep.subr.mxu0 %v441
    %1278 = vmatpush1.msra.mxu0 %v440
    %1279 = vmatprep.subr.mxu0 %v445
    %1280 = vmatpush1.msra.mxu0 %v444
    %1281 = vmatprep.subr.mxu0 %v449
    %1282 = vmatpush1.msra.mxu0 %v448
    %1283 = vmatprep.subr.mxu0 %v453
    %1284 = vmatpush1.msra.mxu0 %v452
    %1285 = vmatprep.subr.mxu0 0.0
    %1286 = vmatpush1.msra.mxu0 0.0
    %1287 = vmatprep.subr.mxu0 0.0
    %1288 = vmatpush1.msra.mxu0 0.0
    %1289 = vmatprep.subr.mxu0 0.0
    %1290 = vmatpush1.msra.mxu0 0.0
    %1291 = vmatprep.subr.mxu0 0.0
    %1292 = vmatpush1.msra.mxu0 0.0
    %1293 = vmatprep.subr.mxu0 0.0
    %1294 = vmatpush1.msra.mxu0 0.0
    %1295 = vmatprep.subr.mxu0 0.0
    %1296 = vmatpush1.msra.mxu0 0.0
    %1297 = vmatprep.subr.mxu0 0.0
    %1298 = vmatpush1.msra.mxu0 0.0
    %1299 = vmatprep.subr.mxu0 0.0
    %1300 = vmatpush1.msra.mxu0 0.0
    %1301 = vmatprep.subr.mxu0 0.0
    %1302 = vmatpush1.msra.mxu0 0.0
    %1303 = vmatprep.subr.mxu0 0.0
    %1304 = vmatpush1.msra.mxu0 0.0
    %1305 = vmatprep.subr.mxu0 0.0
    %1306 = vmatpush1.msra.mxu0 0.0
    %1307 = vmatprep.subr.mxu0 0.0
    %1308 = vmatpush1.msra.mxu0 0.0
    %1309 = vmatprep.subr.mxu0 0.0
    %1310 = vmatpush1.msra.mxu0 0.0
    %1311 = vmatprep.subr.mxu0 0.0
    %1312 = vmatpush1.msra.mxu0 0.0
    %1313 = vmatprep.subr.mxu0 0.0
    %1314 = vmatpush1.msra.mxu0 0.0
    %1315 = vmatprep.subr.mxu0 0.0
    %1316 = vmatpush1.msra.mxu0 0.0
    %1317 = vmatprep.mubr.f32.mxu0 0.0
    %1318 = vmatmul.mubr.f32.gmra.mrb[0].mxu0 %v1181
    %v1319 = vpop.f32.mrb[0].mxu0
    %v1320 = vadd.f32 0.0, %v1319
    %v1321 = vpop.f32.mrb[0].mxu0
    %v1322 = vadd.f32 0.0, %v1321
    %1323 = vdwg.mxu0
    %v1324 = vadd.f32 %v1177, %v1249
    %v1325 = vadd.f32 %v1178, %v1251
    %v1326 = vadd.f32 %v1179, %v1320
    %v1327 = vadd.f32 %v1180, %v1322
    %v1328 = vxor.u32 %v1324, 2147483648
    %v1329 = vmul.f32 %v1328, 1.442695
    %v1330 = vpow.pop %v1329
    %v1331 = vadd.f32 %v1330, 1.0
    %v1332 = vrcp.pop %v1331
    %v1333 = vmul.f32 1.0, %v1332
    %v1334 = vxor.u32 %v1325, 2147483648
    %v1335 = vmul.f32 %v1334, 1.442695
    %v1336 = vpow.pop %v1335
    %v1337 = vadd.f32 %v1336, 1.0
    %v1338 = vrcp.pop %v1337
    %v1339 = vmul.f32 1.0, %v1338
    %v1340 = vxor.u32 %v1326, 2147483648
    %v1341 = vmul.f32 %v1340, 1.442695
    %v1342 = vpow.pop %v1341
    %v1343 = vadd.f32 %v1342, 1.0
    %v1344 = vrcp.pop %v1343
    %v1345 = vmul.f32 1.0, %v1344
    %v1346 = vtanh.pop %v1327
    %v1347 = vld [vmem:[#allocation4] sm:$0xff]
    %v1348 = vmul.f32 %v1347, %v1339
    %v1349 = vmul.f32 %v1333, %v1346
    %v1350 = vadd.f32 %v1348, %v1349
    %v1351 = vtanh.pop %v1350
    %v1352 = vmul.f32 %v1345, %v1351
    %1353 = vst [vmem:[#allocation4] sm:$0xff] %v1350
    %1354 = vst [vmem:[#allocation3] sm:$0xff] %v1352
    %s1355 = scalar_lea.vmem [#allocation11], 32
    %1356 = vst [vmem:[%s1355] sm:$0xff] %v1352
    %s1357 = scalar_lea.vmem [#allocation2], 160
    %v1358 = vld [vmem:[%s1357] sm:$0xff]
    %v1359 = vld [vmem:[%s1357 + $0x8] sm:$0xff]
    %v1360 = vld [vmem:[%s1357 + $0x10] sm:$0xff]
    %v1361 = vld [vmem:[%s1357 + $0x18] sm:$0xff]
    %v1362 = vld [vmem:[#allocation3] sm:$0xff]
    %1363 = vmatprep.subr.mxu0 %v391
    %1364 = vmatpush1.msra.mxu0 %v390
    %1365 = vmatprep.subr.mxu0 %v395
    %1366 = vmatpush1.msra.mxu0 %v394
    %1367 = vmatprep.subr.mxu0 %v399
    %1368 = vmatpush1.msra.mxu0 %v398
    %1369 = vmatprep.subr.mxu0 %v403
    %1370 = vmatpush1.msra.mxu0 %v402
    %1371 = vmatprep.subr.mxu0 %v407
    %1372 = vmatpush1.msra.mxu0 %v406
    %1373 = vmatprep.subr.mxu0 %v411
    %1374 = vmatpush1.msra.mxu0 %v410
    %1375 = vmatprep.subr.mxu0 %v415
    %1376 = vmatpush1.msra.mxu0 %v414
    %1377 = vmatprep.subr.mxu0 %v419
    %1378 = vmatpush1.msra.mxu0 %v418
    %1379 = vmatprep.subr.mxu0 %v423
    %1380 = vmatpush1.msra.mxu0 %v422
    %1381 = vmatprep.subr.mxu0 %v427
    %1382 = vmatpush1.msra.mxu0 %v426
    %1383 = vmatprep.subr.mxu0 %v431
    %1384 = vmatpush1.msra.mxu0 %v430
    %1385 = vmatprep.subr.mxu0 %v435
    %1386 = vmatpush1.msra.mxu0 %v434
    %1387 = vmatprep.subr.mxu0 %v439
    %1388 = vmatpush1.msra.mxu0 %v438
    %1389 = vmatprep.subr.mxu0 %v443
    %1390 = vmatpush1.msra.mxu0 %v442
    %1391 = vmatprep.subr.mxu0 %v447
    %1392 = vmatpush1.msra.mxu0 %v446
    %1393 = vmatprep.subr.mxu0 %v451
    %1394 = vmatpush1.msra.mxu0 %v450
    %1395 = vmatprep.subr.mxu0 0.0
    %1396 = vmatpush1.msra.mxu0 0.0
    %1397 = vmatprep.subr.mxu0 0.0
    %1398 = vmatpush1.msra.mxu0 0.0
    %1399 = vmatprep.subr.mxu0 0.0
    %1400 = vmatpush1.msra.mxu0 0.0
    %1401 = vmatprep.subr.mxu0 0.0
    %1402 = vmatpush1.msra.mxu0 0.0
    %1403 = vmatprep.subr.mxu0 0.0
    %1404 = vmatpush1.msra.mxu0 0.0
    %1405 = vmatprep.subr.mxu0 0.0
    %1406 = vmatpush1.msra.mxu0 0.0
    %1407 = vmatprep.subr.mxu0 0.0
    %1408 = vmatpush1.msra.mxu0 0.0
    %1409 = vmatprep.subr.mxu0 0.0
    %1410 = vmatpush1.msra.mxu0 0.0
    %1411 = vmatprep.subr.mxu0 0.0
    %1412 = vmatpush1.msra.mxu0 0.0
    %1413 = vmatprep.subr.mxu0 0.0
    %1414 = vmatpush1.msra.mxu0 0.0
    %1415 = vmatprep.subr.mxu0 0.0
    %1416 = vmatpush1.msra.mxu0 0.0
    %1417 = vmatprep.subr.mxu0 0.0
    %1418 = vmatpush1.msra.mxu0 0.0
    %1419 = vmatprep.subr.mxu0 0.0
    %1420 = vmatpush1.msra.mxu0 0.0
    %1421 = vmatprep.subr.mxu0 0.0
    %1422 = vmatpush1.msra.mxu0 0.0
    %1423 = vmatprep.subr.mxu0 0.0
    %1424 = vmatpush1.msra.mxu0 0.0
    %1425 = vmatprep.subr.mxu0 0.0
    %1426 = vmatpush1.msra.mxu0 0.0
    %1427 = vmatprep.mubr.f32.mxu0 0.0
    %1428 = vmatmul.mubr.f32.gmra.mrb[0].mxu0 %v1362
    %v1429 = vpop.f32.mrb[0].mxu0
    %v1430 = vadd.f32 0.0, %v1429
    %v1431 = vpop.f32.mrb[0].mxu0
    %v1432 = vadd.f32 0.0, %v1431
    %1433 = vdwg.mxu0
    %1434 = vmatprep.subr.mxu0 %v393
    %1435 = vmatpush1.msra.mxu0 %v392
    %1436 = vmatprep.subr.mxu0 %v397
    %1437 = vmatpush1.msra.mxu0 %v396
    %1438 = vmatprep.subr.mxu0 %v401
    %1439 = vmatpush1.msra.mxu0 %v400
    %1440 = vmatprep.subr.mxu0 %v405
    %1441 = vmatpush1.msra.mxu0 %v404
    %1442 = vmatprep.subr.mxu0 %v409
    %1443 = vmatpush1.msra.mxu0 %v408
    %1444 = vmatprep.subr.mxu0 %v413
    %1445 = vmatpush1.msra.mxu0 %v412
    %1446 = vmatprep.subr.mxu0 %v417
    %1447 = vmatpush1.msra.mxu0 %v416
    %1448 = vmatprep.subr.mxu0 %v421
    %1449 = vmatpush1.msra.mxu0 %v420
    %1450 = vmatprep.subr.mxu0 %v425
    %1451 = vmatpush1.msra.mxu0 %v424
    %1452 = vmatprep.subr.mxu0 %v429
    %1453 = vmatpush1.msra.mxu0 %v428
    %1454 = vmatprep.subr.mxu0 %v433
    %1455 = vmatpush1.msra.mxu0 %v432
    %1456 = vmatprep.subr.mxu0 %v437
    %1457 = vmatpush1.msra.mxu0 %v436
    %1458 = vmatprep.subr.mxu0 %v441
    %1459 = vmatpush1.msra.mxu0 %v440
    %1460 = vmatprep.subr.mxu0 %v445
    %1461 = vmatpush1.msra.mxu0 %v444
    %1462 = vmatprep.subr.mxu0 %v449
    %1463 = vmatpush1.msra.mxu0 %v448
    %1464 = vmatprep.subr.mxu0 %v453
    %1465 = vmatpush1.msra.mxu0 %v452
    %1466 = vmatprep.subr.mxu0 0.0
    %1467 = vmatpush1.msra.mxu0 0.0
    %1468 = vmatprep.subr.mxu0 0.0
    %1469 = vmatpush1.msra.mxu0 0.0
    %1470 = vmatprep.subr.mxu0 0.0
    %1471 = vmatpush1.msra.mxu0 0.0
    %1472 = vmatprep.subr.mxu0 0.0
    %1473 = vmatpush1.msra.mxu0 0.0
    %1474 = vmatprep.subr.mxu0 0.0
    %1475 = vmatpush1.msra.mxu0 0.0
    %1476 = vmatprep.subr.mxu0 0.0
    %1477 = vmatpush1.msra.mxu0 0.0
    %1478 = vmatprep.subr.mxu0 0.0
    %1479 = vmatpush1.msra.mxu0 0.0
    %1480 = vmatprep.subr.mxu0 0.0
    %1481 = vmatpush1.msra.mxu0 0.0
    %1482 = vmatprep.subr.mxu0 0.0
    %1483 = vmatpush1.msra.mxu0 0.0
    %1484 = vmatprep.subr.mxu0 0.0
    %1485 = vmatpush1.msra.mxu0 0.0
    %1486 = vmatprep.subr.mxu0 0.0
    %1487 = vmatpush1.msra.mxu0 0.0
    %1488 = vmatprep.subr.mxu0 0.0
    %1489 = vmatpush1.msra.mxu0 0.0
    %1490 = vmatprep.subr.mxu0 0.0
    %1491 = vmatpush1.msra.mxu0 0.0
    %1492 = vmatprep.subr.mxu0 0.0
    %1493 = vmatpush1.msra.mxu0 0.0
    %1494 = vmatprep.subr.mxu0 0.0
    %1495 = vmatpush1.msra.mxu0 0.0
    %1496 = vmatprep.subr.mxu0 0.0
    %1497 = vmatpush1.msra.mxu0 0.0
    %1498 = vmatprep.mubr.f32.mxu0 0.0
    %1499 = vmatmul.mubr.f32.gmra.mrb[0].mxu0 %v1362
    %v1500 = vpop.f32.mrb[0].mxu0
    %v1501 = vadd.f32 0.0, %v1500
    %v1502 = vpop.f32.mrb[0].mxu0
    %v1503 = vadd.f32 0.0, %v1502
    %1504 = vdwg.mxu0
    %v1505 = vadd.f32 %v1358, %v1430
    %v1506 = vadd.f32 %v1359, %v1432
    %v1507 = vadd.f32 %v1360, %v1501
    %v1508 = vadd.f32 %v1361, %v1503
    %v1509 = vxor.u32 %v1505, 2147483648
    %v1510 = vmul.f32 %v1509, 1.442695
    %v1511 = vpow.pop %v1510
    %v1512 = vadd.f32 %v1511, 1.0
    %v1513 = vrcp.pop %v1512
    %v1514 = vmul.f32 1.0, %v1513
    %v1515 = vxor.u32 %v1506, 2147483648
    %v1516 = vmul.f32 %v1515, 1.442695
    %v1517 = vpow.pop %v1516
    %v1518 = vadd.f32 %v1517, 1.0
    %v1519 = vrcp.pop %v1518
    %v1520 = vmul.f32 1.0, %v1519
    %v1521 = vxor.u32 %v1507, 2147483648
    %v1522 = vmul.f32 %v1521, 1.442695
    %v1523 = vpow.pop %v1522
    %v1524 = vadd.f32 %v1523, 1.0
    %v1525 = vrcp.pop %v1524
    %v1526 = vmul.f32 1.0, %v1525
    %v1527 = vtanh.pop %v1508
    %v1528 = vld [vmem:[#allocation4] sm:$0xff]
    %v1529 = vmul.f32 %v1528, %v1520
    %v1530 = vmul.f32 %v1514, %v1527
    %v1531 = vadd.f32 %v1529, %v1530
    %v1532 = vtanh.pop %v1531
    %v1533 = vmul.f32 %v1526, %v1532
    %1534 = vst [vmem:[#allocation4] sm:$0xff] %v1531
    %1535 = vst [vmem:[#allocation3] sm:$0xff] %v1533
    %s1536 = scalar_lea.vmem [#allocation11], 40
    %1537 = vst [vmem:[%s1536] sm:$0xff] %v1533
    %s1538 = scalar_lea.vmem [#allocation2], 192
    %v1539 = vld [vmem:[%s1538] sm:$0xff]
    %v1540 = vld [vmem:[%s1538 + $0x8] sm:$0xff]
    %v1541 = vld [vmem:[%s1538 + $0x10] sm:$0xff]
    %v1542 = vld [vmem:[%s1538 + $0x18] sm:$0xff]
    %v1543 = vld [vmem:[#allocation3] sm:$0xff]
    %1544 = vmatprep.subr.mxu0 %v391
    %1545 = vmatpush1.msra.mxu0 %v390
    %1546 = vmatprep.subr.mxu0 %v395
    %1547 = vmatpush1.msra.mxu0 %v394
    %1548 = vmatprep.subr.mxu0 %v399
    %1549 = vmatpush1.msra.mxu0 %v398
    %1550 = vmatprep.subr.mxu0 %v403
    %1551 = vmatpush1.msra.mxu0 %v402
    %1552 = vmatprep.subr.mxu0 %v407
    %1553 = vmatpush1.msra.mxu0 %v406
    %1554 = vmatprep.subr.mxu0 %v411
    %1555 = vmatpush1.msra.mxu0 %v410
    %1556 = vmatprep.subr.mxu0 %v415
    %1557 = vmatpush1.msra.mxu0 %v414
    %1558 = vmatprep.subr.mxu0 %v419
    %1559 = vmatpush1.msra.mxu0 %v418
    %1560 = vmatprep.subr.mxu0 %v423
    %1561 = vmatpush1.msra.mxu0 %v422
    %1562 = vmatprep.subr.mxu0 %v427
    %1563 = vmatpush1.msra.mxu0 %v426
    %1564 = vmatprep.subr.mxu0 %v431
    %1565 = vmatpush1.msra.mxu0 %v430
    %1566 = vmatprep.subr.mxu0 %v435
    %1567 = vmatpush1.msra.mxu0 %v434
    %1568 = vmatprep.subr.mxu0 %v439
    %1569 = vmatpush1.msra.mxu0 %v438
    %1570 = vmatprep.subr.mxu0 %v443
    %1571 = vmatpush1.msra.mxu0 %v442
    %1572 = vmatprep.subr.mxu0 %v447
    %1573 = vmatpush1.msra.mxu0 %v446
    %1574 = vmatprep.subr.mxu0 %v451
    %1575 = vmatpush1.msra.mxu0 %v450
    %1576 = vmatprep.subr.mxu0 0.0
    %1577 = vmatpush1.msra.mxu0 0.0
    %1578 = vmatprep.subr.mxu0 0.0
    %1579 = vmatpush1.msra.mxu0 0.0
    %1580 = vmatprep.subr.mxu0 0.0
    %1581 = vmatpush1.msra.mxu0 0.0
    %1582 = vmatprep.subr.mxu0 0.0
    %1583 = vmatpush1.msra.mxu0 0.0
    %1584 = vmatprep.subr.mxu0 0.0
    %1585 = vmatpush1.msra.mxu0 0.0
    %1586 = vmatprep.subr.mxu0 0.0
    %1587 = vmatpush1.msra.mxu0 0.0
    %1588 = vmatprep.subr.mxu0 0.0
    %1589 = vmatpush1.msra.mxu0 0.0
    %1590 = vmatprep.subr.mxu0 0.0
    %1591 = vmatpush1.msra.mxu0 0.0
    %1592 = vmatprep.subr.mxu0 0.0
    %1593 = vmatpush1.msra.mxu0 0.0
    %1594 = vmatprep.subr.mxu0 0.0
    %1595 = vmatpush1.msra.mxu0 0.0
    %1596 = vmatprep.subr.mxu0 0.0
    %1597 = vmatpush1.msra.mxu0 0.0
    %1598 = vmatprep.subr.mxu0 0.0
    %1599 = vmatpush1.msra.mxu0 0.0
    %1600 = vmatprep.subr.mxu0 0.0
    %1601 = vmatpush1.msra.mxu0 0.0
    %1602 = vmatprep.subr.mxu0 0.0
    %1603 = vmatpush1.msra.mxu0 0.0
    %1604 = vmatprep.subr.mxu0 0.0
    %1605 = vmatpush1.msra.mxu0 0.0
    %1606 = vmatprep.subr.mxu0 0.0
    %1607 = vmatpush1.msra.mxu0 0.0
    %1608 = vmatprep.mubr.f32.mxu0 0.0
    %1609 = vmatmul.mubr.f32.gmra.mrb[0].mxu0 %v1543
    %v1610 = vpop.f32.mrb[0].mxu0
    %v1611 = vadd.f32 0.0, %v1610
    %v1612 = vpop.f32.mrb[0].mxu0
    %v1613 = vadd.f32 0.0, %v1612
    %1614 = vdwg.mxu0
    %1615 = vmatprep.subr.mxu0 %v393
    %1616 = vmatpush1.msra.mxu0 %v392
    %1617 = vmatprep.subr.mxu0 %v397
    %1618 = vmatpush1.msra.mxu0 %v396
    %1619 = vmatprep.subr.mxu0 %v401
    %1620 = vmatpush1.msra.mxu0 %v400
    %1621 = vmatprep.subr.mxu0 %v405
    %1622 = vmatpush1.msra.mxu0 %v404
    %1623 = vmatprep.subr.mxu0 %v409
    %1624 = vmatpush1.msra.mxu0 %v408
    %1625 = vmatprep.subr.mxu0 %v413
    %1626 = vmatpush1.msra.mxu0 %v412
    %1627 = vmatprep.subr.mxu0 %v417
    %1628 = vmatpush1.msra.mxu0 %v416
    %1629 = vmatprep.subr.mxu0 %v421
    %1630 = vmatpush1.msra.mxu0 %v420
    %1631 = vmatprep.subr.mxu0 %v425
    %1632 = vmatpush1.msra.mxu0 %v424
    %1633 = vmatprep.subr.mxu0 %v429
    %1634 = vmatpush1.msra.mxu0 %v428
    %1635 = vmatprep.subr.mxu0 %v433
    %1636 = vmatpush1.msra.mxu0 %v432
    %1637 = vmatprep.subr.mxu0 %v437
    %1638 = vmatpush1.msra.mxu0 %v436
    %1639 = vmatprep.subr.mxu0 %v441
    %1640 = vmatpush1.msra.mxu0 %v440
    %1641 = vmatprep.subr.mxu0 %v445
    %1642 = vmatpush1.msra.mxu0 %v444
    %1643 = vmatprep.subr.mxu0 %v449
    %1644 = vmatpush1.msra.mxu0 %v448
    %1645 = vmatprep.subr.mxu0 %v453
    %1646 = vmatpush1.msra.mxu0 %v452
    %1647 = vmatprep.subr.mxu0 0.0
    %1648 = vmatpush1.msra.mxu0 0.0
    %1649 = vmatprep.subr.mxu0 0.0
    %1650 = vmatpush1.msra.mxu0 0.0
    %1651 = vmatprep.subr.mxu0 0.0
    %1652 = vmatpush1.msra.mxu0 0.0
    %1653 = vmatprep.subr.mxu0 0.0
    %1654 = vmatpush1.msra.mxu0 0.0
    %1655 = vmatprep.subr.mxu0 0.0
    %1656 = vmatpush1.msra.mxu0 0.0
    %1657 = vmatprep.subr.mxu0 0.0
    %1658 = vmatpush1.msra.mxu0 0.0
    %1659 = vmatprep.subr.mxu0 0.0
    %1660 = vmatpush1.msra.mxu0 0.0
    %1661 = vmatprep.subr.mxu0 0.0
    %1662 = vmatpush1.msra.mxu0 0.0
    %1663 = vmatprep.subr.mxu0 0.0
    %1664 = vmatpush1.msra.mxu0 0.0
    %1665 = vmatprep.subr.mxu0 0.0
    %1666 = vmatpush1.msra.mxu0 0.0
    %1667 = vmatprep.subr.mxu0 0.0
    %1668 = vmatpush1.msra.mxu0 0.0
    %1669 = vmatprep.subr.mxu0 0.0
    %1670 = vmatpush1.msra.mxu0 0.0
    %1671 = vmatprep.subr.mxu0 0.0
    %1672 = vmatpush1.msra.mxu0 0.0
    %1673 = vmatprep.subr.mxu0 0.0
    %1674 = vmatpush1.msra.mxu0 0.0
    %1675 = vmatprep.subr.mxu0 0.0
    %1676 = vmatpush1.msra.mxu0 0.0
    %1677 = vmatprep.subr.mxu0 0.0
    %1678 = vmatpush1.msra.mxu0 0.0
    %1679 = vmatprep.mubr.f32.mxu0 0.0
    %1680 = vmatmul.mubr.f32.gmra.mrb[0].mxu0 %v1543
    %v1681 = vpop.f32.mrb[0].mxu0
    %v1682 = vadd.f32 0.0, %v1681
    %v1683 = vpop.f32.mrb[0].mxu0
    %v1684 = vadd.f32 0.0, %v1683
    %1685 = vdwg.mxu0
    %v1686 = vadd.f32 %v1539, %v1611
    %v1687 = vadd.f32 %v1540, %v1613
    %v1688 = vadd.f32 %v1541, %v1682
    %v1689 = vadd.f32 %v1542, %v1684
    %v1690 = vxor.u32 %v1686, 2147483648
    %v1691 = vmul.f32 %v1690, 1.442695
    %v1692 = vpow.pop %v1691
    %v1693 = vadd.f32 %v1692, 1.0
    %v1694 = vrcp.pop %v1693
    %v1695 = vmul.f32 1.0, %v1694
    %v1696 = vxor.u32 %v1687, 2147483648
    %v1697 = vmul.f32 %v1696, 1.442695
    %v1698 = vpow.pop %v1697
    %v1699 = vadd.f32 %v1698, 1.0
    %v1700 = vrcp.pop %v1699
    %v1701 = vmul.f32 1.0, %v1700
    %v1702 = vxor.u32 %v1688, 2147483648
    %v1703 = vmul.f32 %v1702, 1.442695
    %v1704 = vpow.pop %v1703
    %v1705 = vadd.f32 %v1704, 1.0
    %v1706 = vrcp.pop %v1705
    %v1707 = vmul.f32 1.0, %v1706
    %v1708 = vtanh.pop %v1689
    %v1709 = vld [vmem:[#allocation4] sm:$0xff]
    %v1710 = vmul.f32 %v1709, %v1701
    %v1711 = vmul.f32 %v1695, %v1708
    %v1712 = vadd.f32 %v1710, %v1711
    %v1713 = vtanh.pop %v1712
    %v1714 = vmul.f32 %v1707, %v1713
    %1715 = vst [vmem:[#allocation4] sm:$0xff] %v1712
    %1716 = vst [vmem:[#allocation3] sm:$0xff] %v1714
    %s1717 = scalar_lea.vmem [#allocation11], 48
    %1718 = vst [vmem:[%s1717] sm:$0xff] %v1714
    %s1719 = scalar_lea.vmem [#allocation2], 224
    %v1720 = vld [vmem:[%s1719] sm:$0xff]
    %v1721 = vld [vmem:[%s1719 + $0x8] sm:$0xff]
    %v1722 = vld [vmem:[%s1719 + $0x10] sm:$0xff]
    %v1723 = vld [vmem:[%s1719 + $0x18] sm:$0xff]
    %v1724 = vld [vmem:[#allocation3] sm:$0xff]
    %1725 = vmatprep.subr.mxu0 %v391
    %1726 = vmatpush1.msra.mxu0 %v390
    %1727 = vmatprep.subr.mxu0 %v395
    %1728 = vmatpush1.msra.mxu0 %v394
    %1729 = vmatprep.subr.mxu0 %v399
    %1730 = vmatpush1.msra.mxu0 %v398
    %1731 = vmatprep.subr.mxu0 %v403
    %1732 = vmatpush1.msra.mxu0 %v402
    %1733 = vmatprep.subr.mxu0 %v407
    %1734 = vmatpush1.msra.mxu0 %v406
    %1735 = vmatprep.subr.mxu0 %v411
    %1736 = vmatpush1.msra.mxu0 %v410
    %1737 = vmatprep.subr.mxu0 %v415
    %1738 = vmatpush1.msra.mxu0 %v414
    %1739 = vmatprep.subr.mxu0 %v419
    %1740 = vmatpush1.msra.mxu0 %v418
    %1741 = vmatprep.subr.mxu0 %v423
    %1742 = vmatpush1.msra.mxu0 %v422
    %1743 = vmatprep.subr.mxu0 %v427
    %1744 = vmatpush1.msra.mxu0 %v426
    %1745 = vmatprep.subr.mxu0 %v431
    %1746 = vmatpush1.msra.mxu0 %v430
    %1747 = vmatprep.subr.mxu0 %v435
    %1748 = vmatpush1.msra.mxu0 %v434
    %1749 = vmatprep.subr.mxu0 %v439
    %1750 = vmatpush1.msra.mxu0 %v438
    %1751 = vmatprep.subr.mxu0 %v443
    %1752 = vmatpush1.msra.mxu0 %v442
    %1753 = vmatprep.subr.mxu0 %v447
    %1754 = vmatpush1.msra.mxu0 %v446
    %1755 = vmatprep.subr.mxu0 %v451
    %1756 = vmatpush1.msra.mxu0 %v450
    %1757 = vmatprep.subr.mxu0 0.0
    %1758 = vmatpush1.msra.mxu0 0.0
    %1759 = vmatprep.subr.mxu0 0.0
    %1760 = vmatpush1.msra.mxu0 0.0
    %1761 = vmatprep.subr.mxu0 0.0
    %1762 = vmatpush1.msra.mxu0 0.0
    %1763 = vmatprep.subr.mxu0 0.0
    %1764 = vmatpush1.msra.mxu0 0.0
    %1765 = vmatprep.subr.mxu0 0.0
    %1766 = vmatpush1.msra.mxu0 0.0
    %1767 = vmatprep.subr.mxu0 0.0
    %1768 = vmatpush1.msra.mxu0 0.0
    %1769 = vmatprep.subr.mxu0 0.0
    %1770 = vmatpush1.msra.mxu0 0.0
    %1771 = vmatprep.subr.mxu0 0.0
    %1772 = vmatpush1.msra.mxu0 0.0
    %1773 = vmatprep.subr.mxu0 0.0
    %1774 = vmatpush1.msra.mxu0 0.0
    %1775 = vmatprep.subr.mxu0 0.0
    %1776 = vmatpush1.msra.mxu0 0.0
    %1777 = vmatprep.subr.mxu0 0.0
    %1778 = vmatpush1.msra.mxu0 0.0
    %1779 = vmatprep.subr.mxu0 0.0
    %1780 = vmatpush1.msra.mxu0 0.0
    %1781 = vmatprep.subr.mxu0 0.0
    %1782 = vmatpush1.msra.mxu0 0.0
    %1783 = vmatprep.subr.mxu0 0.0
    %1784 = vmatpush1.msra.mxu0 0.0
    %1785 = vmatprep.subr.mxu0 0.0
    %1786 = vmatpush1.msra.mxu0 0.0
    %1787 = vmatprep.subr.mxu0 0.0
    %1788 = vmatpush1.msra.mxu0 0.0
    %1789 = vmatprep.mubr.f32.mxu0 0.0
    %1790 = vmatmul.mubr.f32.gmra.mrb[0].mxu0 %v1724
    %v1791 = vpop.f32.mrb[0].mxu0
    %v1792 = vadd.f32 0.0, %v1791
    %v1793 = vpop.f32.mrb[0].mxu0
    %v1794 = vadd.f32 0.0, %v1793
    %1795 = vdwg.mxu0
    %1796 = vmatprep.subr.mxu0 %v393
    %1797 = vmatpush1.msra.mxu0 %v392
    %1798 = vmatprep.subr.mxu0 %v397
    %1799 = vmatpush1.msra.mxu0 %v396
    %1800 = vmatprep.subr.mxu0 %v401
    %1801 = vmatpush1.msra.mxu0 %v400
    %1802 = vmatprep.subr.mxu0 %v405
    %1803 = vmatpush1.msra.mxu0 %v404
    %1804 = vmatprep.subr.mxu0 %v409
    %1805 = vmatpush1.msra.mxu0 %v408
    %1806 = vmatprep.subr.mxu0 %v413
    %1807 = vmatpush1.msra.mxu0 %v412
    %1808 = vmatprep.subr.mxu0 %v417
    %1809 = vmatpush1.msra.mxu0 %v416
    %1810 = vmatprep.subr.mxu0 %v421
    %1811 = vmatpush1.msra.mxu0 %v420
    %1812 = vmatprep.subr.mxu0 %v425
    %1813 = vmatpush1.msra.mxu0 %v424
    %1814 = vmatprep.subr.mxu0 %v429
    %1815 = vmatpush1.msra.mxu0 %v428
    %1816 = vmatprep.subr.mxu0 %v433
    %1817 = vmatpush1.msra.mxu0 %v432
    %1818 = vmatprep.subr.mxu0 %v437
    %1819 = vmatpush1.msra.mxu0 %v436
    %1820 = vmatprep.subr.mxu0 %v441
    %1821 = vmatpush1.msra.mxu0 %v440
    %1822 = vmatprep.subr.mxu0 %v445
    %1823 = vmatpush1.msra.mxu0 %v444
    %1824 = vmatprep.subr.mxu0 %v449
    %1825 = vmatpush1.msra.mxu0 %v448
    %1826 = vmatprep.subr.mxu0 %v453
    %1827 = vmatpush1.msra.mxu0 %v452
    %1828 = vmatprep.subr.mxu0 0.0
    %1829 = vmatpush1.msra.mxu0 0.0
    %1830 = vmatprep.subr.mxu0 0.0
    %1831 = vmatpush1.msra.mxu0 0.0
    %1832 = vmatprep.subr.mxu0 0.0
    %1833 = vmatpush1.msra.mxu0 0.0
    %1834 = vmatprep.subr.mxu0 0.0
    %1835 = vmatpush1.msra.mxu0 0.0
    %1836 = vmatprep.subr.mxu0 0.0
    %1837 = vmatpush1.msra.mxu0 0.0
    %1838 = vmatprep.subr.mxu0 0.0
    %1839 = vmatpush1.msra.mxu0 0.0
    %1840 = vmatprep.subr.mxu0 0.0
    %1841 = vmatpush1.msra.mxu0 0.0
    %1842 = vmatprep.subr.mxu0 0.0
    %1843 = vmatpush1.msra.mxu0 0.0
    %1844 = vmatprep.subr.mxu0 0.0
    %1845 = vmatpush1.msra.mxu0 0.0
    %1846 = vmatprep.subr.mxu0 0.0
    %1847 = vmatpush1.msra.mxu0 0.0
    %1848 = vmatprep.subr.mxu0 0.0
    %1849 = vmatpush1.msra.mxu0 0.0
    %1850 = vmatprep.subr.mxu0 0.0
    %1851 = vmatpush1.msra.mxu0 0.0
    %1852 = vmatprep.subr.mxu0 0.0
    %1853 = vmatpush1.msra.mxu0 0.0
    %1854 = vmatprep.subr.mxu0 0.0
    %1855 = vmatpush1.msra.mxu0 0.0
    %1856 = vmatprep.subr.mxu0 0.0
    %1857 = vmatpush1.msra.mxu0 0.0
    %1858 = vmatprep.subr.mxu0 0.0
    %1859 = vmatpush1.msra.mxu0 0.0
    %1860 = vmatprep.mubr.f32.mxu0 0.0
    %1861 = vmatmul.mubr.f32.gmra.mrb[0].mxu0 %v1724
    %v1862 = vpop.f32.mrb[0].mxu0
    %v1863 = vadd.f32 0.0, %v1862
    %v1864 = vpop.f32.mrb[0].mxu0
    %v1865 = vadd.f32 0.0, %v1864
    %1866 = vdwg.mxu0
    %v1867 = vadd.f32 %v1720, %v1792
    %v1868 = vadd.f32 %v1721, %v1794
    %v1869 = vadd.f32 %v1722, %v1863
    %v1870 = vadd.f32 %v1723, %v1865
    %v1871 = vxor.u32 %v1867, 2147483648
    %v1872 = vmul.f32 %v1871, 1.442695
    %v1873 = vpow.pop %v1872
    %v1874 = vadd.f32 %v1873, 1.0
    %v1875 = vrcp.pop %v1874
    %v1876 = vmul.f32 1.0, %v1875
    %v1877 = vxor.u32 %v1868, 2147483648
    %v1878 = vmul.f32 %v1877, 1.442695
    %v1879 = vpow.pop %v1878
    %v1880 = vadd.f32 %v1879, 1.0
    %v1881 = vrcp.pop %v1880
    %v1882 = vmul.f32 1.0, %v1881
    %v1883 = vxor.u32 %v1869, 2147483648
    %v1884 = vmul.f32 %v1883, 1.442695
    %v1885 = vpow.pop %v1884
    %v1886 = vadd.f32 %v1885, 1.0
    %v1887 = vrcp.pop %v1886
    %v1888 = vmul.f32 1.0, %v1887
    %v1889 = vtanh.pop %v1870
    %v1890 = vld [vmem:[#allocation4] sm:$0xff]
    %v1891 = vmul.f32 %v1890, %v1882
    %v1892 = vmul.f32 %v1876, %v1889
    %v1893 = vadd.f32 %v1891, %v1892
    %v1894 = vtanh.pop %v1893
    %v1895 = vmul.f32 %v1888, %v1894
    %1896 = vst [vmem:[#allocation4] sm:$0xff] %v1893
    %1897 = vst [vmem:[#allocation3] sm:$0xff] %v1895
    %s1898 = scalar_lea.vmem [#allocation11], 56
    %1899 = vst [vmem:[%s1898] sm:$0xff] %v1895
    // Predicated region
    $region34: #{tpu_custom_call.1} parent=1 // pred_check
      %p1900 = pneg %p63
    $region35: #{tpu_custom_call.1} parent=1 // pred_check_branch
      %1902 = sbr.rel (%p1900) target = $region37
    $region36: #{tpu_custom_call.1} parent=1 // pred_region
      %v1903 = vld [vmem:[#allocation3] sm:$0xff]
      %1904 = vst [vmem:[#allocation12] sm:$0xff] %v1903
      %v1905 = vld [vmem:[#allocation4] sm:$0xff]
      %1906 = vst [vmem:[#allocation14] sm:$0xff] %v1905
    $region37: #{tpu_custom_call.1} parent=1 // pred_fallthru
      _
    // Predicated region
    $region38: #{tpu_custom_call.1} parent=1 // pred_check
      _
    $region39: #{tpu_custom_call.1} parent=1 // pred_check_branch
      %1908 = sbr.rel (0) target = $region41
    $region40: #{tpu_custom_call.1} parent=1 // pred_region
      %s1910 = ssub.s32 1024, 1024
      %1911 = vsyncadd [#allocation7], %s1910
      %s1912 = sshll.u32 [#allocation11], 4
      %s1913 = int_to_ptr.vmem [resolvable:$true] %s1912
      %1918 = dma.vmem_to_hbm [thread:$0]  %s1913, 1024, %s4, [#allocation7], 128, 128, 8
    $region41: #{tpu_custom_call.1} parent=1 // pred_fallthru
      _
    // Predicated region
    $region42: #{tpu_custom_call.1} parent=1 // pred_check
      _
    $region43: #{tpu_custom_call.1} parent=1 // pred_check_branch
      %1920 = sbr.rel (0) target = $region45
    $region44: #{tpu_custom_call.1} parent=1 // pred_region
      %s1922 = ssub.s32 128, 128
      %1923 = vsyncadd [#allocation13], %s1922
      %s1925 = sshll.u32 [#allocation12], 4
      %s1926 = int_to_ptr.vmem [resolvable:$true] %s1925
      %1928 = dma.vmem_to_hbm [thread:$0]  %s1926, 128, %s5, [#allocation13]
    $region45: #{tpu_custom_call.1} parent=1 // pred_fallthru
      _
    // Predicated region
    $region46: #{tpu_custom_call.1} parent=1 // pred_check
      _
    $region47: #{tpu_custom_call.1} parent=1 // pred_check_branch
      %1930 = sbr.rel (0) target = $region49
    $region48: #{tpu_custom_call.1} parent=1 // pred_region
      %s1932 = ssub.s32 128, 128
      %1933 = vsyncadd [#allocation13], %s1932
      %s1935 = sshll.u32 [#allocation14], 4
      %s1936 = int_to_ptr.vmem [resolvable:$true] %s1935
      %1938 = dma.vmem_to_hbm [thread:$0]  %s1936, 128, %s6, [#allocation13]
    $region49: #{tpu_custom_call.1} parent=1 // pred_fallthru
      _
    // Predicated region
    $region50: #{tpu_custom_call.1} parent=1 // pred_check
      _
    $region51: #{tpu_custom_call.1} parent=1 // pred_check_branch
      %1940 = sbr.rel (0) target = $region53
    $region52: #{tpu_custom_call.1} parent=1 // pred_region
      %1941 = dma.done [#allocation7], 1024
    $region53: #{tpu_custom_call.1} parent=1 // pred_fallthru
      _
    // Predicated region
    $region54: #{tpu_custom_call.1} parent=1 // pred_check
      _
    $region55: #{tpu_custom_call.1} parent=1 // pred_check_branch
      %1943 = sbr.rel (0) target = $region57
    $region56: #{tpu_custom_call.1} parent=1 // pred_region
      %1944 = dma.done [#allocation13], 128
    $region57: #{tpu_custom_call.1} parent=1 // pred_fallthru
      _
    // Predicated region
    $region58: #{tpu_custom_call.1} parent=1 // pred_check
      _
    $region59: #{tpu_custom_call.1} parent=1 // pred_check_branch
      %1946 = sbr.rel (0) target = $region61
    $region60: #{tpu_custom_call.1} parent=1 // pred_region
      %1947 = dma.done [#allocation13], 128
    $region61: #{tpu_custom_call.1} parent=1 // pred_fallthru
      _
    %1948 = vsyncpa [#allocation6], 1
    %1949 = vsyncpa [#allocation9], 1
    %1950 = vsyncpa [#allocation7], 1
    %1951 = vsyncpa [#allocation13], 1

</llo_original>
